<compile_context>
chip_gen: v6e
topology: v6e:2x2x1
jax: 0.10.0
libtpu: 0.0.40
codegen_flags: <defaults>
</compile_context>

<pallas_src>
import math

import jax
import jax.numpy as jnp
from jax.experimental import pallas as pl

# -------------------- tiny BERT config --------------------
B = 2          # batch
S = 8          # sequence length
H = 32         # hidden size
NH = 2         # attention heads
DH = H // NH   # head dim
I = 64         # intermediate (FFN) size
L = 2          # encoder layers
VOCAB = 100
MAXPOS = 64
NTYPES = 2
LN_EPS = 1e-12
MASK_NEG = -10000.0   # classic BERT additive mask value

# packed bias/LN slab layout: one vector per row, padded to 3H lanes, f32
VROW = 3 * H
R_EMB_G, R_EMB_B, R_POOL_B, R_CLS_W, R_CLS_B = 0, 1, 2, 3, 4
_PER_LAYER = 8        # bqkv, bo, ln1_g, ln1_b, b1, b2, ln2_g, ln2_b
NV = 5 + _PER_LAYER * L


def _lrow(l):
    return 5 + _PER_LAYER * l


# -------------------- fused forward kernel --------------------
def _bert_fused_kernel(emb_ref, maskadd_ref, wa_ref, wb_ref, vecs_ref, out_ref):
    scale = 1.0 / math.sqrt(DH)
    c_gelu = math.sqrt(2.0 / math.pi)

    def vec(row, n):                              # (1, n) f32 bias / LN vector
        return vecs_ref[row:row + 1, 0:n]

    def layer_norm(x, g, b):                      # f32 throughout
        mu = jnp.mean(x, axis=-1, keepdims=True)
        d = x - mu
        var = jnp.mean(d * d, axis=-1, keepdims=True)
        return d * jax.lax.rsqrt(var + LN_EPS) * g + b

    def mm(x, w):                                 # bf16 MXU inputs, f32 accumulation
        return jnp.dot(x.astype(jnp.bfloat16), w.astype(jnp.bfloat16),
                       preferred_element_type=jnp.float32)

    # embedding LayerNorm (no residual)
    x = layer_norm(emb_ref[...], vec(R_EMB_G, H), vec(R_EMB_B, H))        # (B*S, H) f32

    # already-additive key mask, hoisted out of the layer/head loops
    mask_add = jnp.broadcast_to(maskadd_ref[...][:, None, :], (B, S, S))  # (B, S, S)

    for l in range(L):                            # static unroll over layers
        wl = wa_ref[l]                            # (H, 3H + H + I) bf16
        w_qkv = wl[:, 0:3 * H]
        w_o = wl[:, 3 * H:4 * H]
        w_1 = wl[:, 4 * H:4 * H + I]
        r = _lrow(l)

        # ---- fused QKV projection: one (B*S, H) @ (H, 3H) matmul ----
        qkv = mm(x, w_qkv) + vec(r + 0, 3 * H)                            # (B*S, 3H) f32

        # ---- multi-head attention; per-head output-projection accumulation ----
        attn = None
        for h in range(NH):                       # static unroll over NH = 2 heads
            q = qkv[:, h * DH:(h + 1) * DH].reshape(B, S, DH)
            k = qkv[:, H + h * DH:H + (h + 1) * DH].reshape(B, S, DH)
            v = qkv[:, 2 * H + h * DH:2 * H + (h + 1) * DH].reshape(B, S, DH)
            s = jnp.einsum('bqd,bkd->bqk',
                           q.astype(jnp.bfloat16), k.astype(jnp.bfloat16),
                           preferred_element_type=jnp.float32) * scale + mask_add
            m = jnp.max(s, axis=-1, keepdims=True)
            p = jnp.exp(s - m)
            p = p * pl.reciprocal(jnp.sum(p, axis=-1, keepdims=True), approx=True)
            c = jnp.einsum('bqk,bkd->bqd',
                           p.astype(jnp.bfloat16), v.astype(jnp.bfloat16),
                           preferred_element_type=jnp.float32)            # (B, S, DH) f32
            # per-head slab of W_O: no lane-axis concat of head contexts
            part = mm(c.reshape(B * S, DH), w_o[h * DH:(h + 1) * DH, :])  # (B*S, H) f32
            attn = part if attn is None else attn + part
        attn = attn + vec(r + 1, H)
        x = layer_norm(attn + x, vec(r + 2, H), vec(r + 3, H))

        # ---- feed-forward (tanh-approx GELU -> EUP) + residual + LayerNorm ----
        hmid = mm(x, w_1) + vec(r + 4, I)
        hmid = 0.5 * hmid * (1.0 + jnp.tanh(c_gelu * (hmid + 0.044715 * hmid * hmid * hmid)))
        ffn = mm(hmid, wb_ref[l]) + vec(r + 5, H)
        x = layer_norm(ffn + x, vec(r + 6, H), vec(r + 7, H))

    # ---- pooler ([CLS] via reshape, no per-row slices/concat) + classifier (num_labels=1) ----
    cls = x.reshape(B, S, H)[:, 0, :]                                     # (B, H)
    pool_w = wb_ref[L][0:H, :]                                            # (H, H) bf16
    pooled = jnp.tanh(mm(cls, pool_w) + vec(R_POOL_B, H))                 # (B, H)
    # classifier as VPU multiply + lane reduction (avoid an N=1 MXU matmul)
    logits = jnp.sum(pooled * vec(R_CLS_W, H), axis=-1, keepdims=True) + vec(R_CLS_B, 1)
    out_ref[...] = logits                                                 # (B, 1)


def _full_spec(shape):
    nd = len(shape)
    return pl.BlockSpec(shape, lambda *_: (0,) * nd)


# -------------------- parameter init (deterministic, synthetic) --------------------
def init_params(key):
    def nrm(k, shape, std=0.02):
        return std * jax.random.normal(k, shape, dtype=jnp.float32)

    keys = iter(jax.random.split(key, 64))
    return {
        "word_emb": nrm(next(keys), (VOCAB, H)),
        "pos_emb": nrm(next(keys), (MAXPOS, H)),
        "type_emb": nrm(next(keys), (NTYPES, H)),
        "emb_ln_g": jnp.ones((1, H), jnp.float32),
        "emb_ln_b": jnp.zeros((1, H), jnp.float32),
        # per-layer weights stacked on a leading L axis; QKV fused to (H, 3H)
        "wqkv": nrm(next(keys), (L, H, 3 * H)),
        "bqkv": jnp.zeros((L, 1, 3 * H), jnp.float32),
        "wo": nrm(next(keys), (L, H, H)),
        "bo": jnp.zeros((L, 1, H), jnp.float32),
        "ln1_g": jnp.ones((L, 1, H), jnp.float32),
        "ln1_b": jnp.zeros((L, 1, H), jnp.float32),
        "w1": nrm(next(keys), (L, H, I)),
        "b1": jnp.zeros((L, 1, I), jnp.float32),
        "w2": nrm(next(keys), (L, I, H)),
        "b2": jnp.zeros((L, 1, H), jnp.float32),
        "ln2_g": jnp.ones((L, 1, H), jnp.float32),
        "ln2_b": jnp.zeros((L, 1, H), jnp.float32),
        "pool_w": nrm(next(keys), (H, H)),
        "pool_b": jnp.zeros((1, H), jnp.float32),
        "cls_w": nrm(next(keys), (1, H)),
        "cls_b": jnp.zeros((1, 1), jnp.float32),
    }


# -------------------- host-side operand packing (free layout plumbing) --------------------
def _pack_params(params):
    """Pack the 20 tiny per-op parameters into 3 slabs (wa bf16, wb bf16, vecs f32)."""
    w_a = jnp.concatenate([params["wqkv"], params["wo"], params["w1"]],
                          axis=-1).astype(jnp.bfloat16)                       # (L, H, 4H+I)
    pool_slot = jnp.zeros((1, I, H), jnp.float32).at[0, :H, :].set(params["pool_w"])
    w_b = jnp.concatenate([params["w2"], pool_slot], axis=0).astype(jnp.bfloat16)  # (L+1, I, H)

    def row(v):
        return jnp.pad(v, ((0, 0), (0, VROW - v.shape[-1])))

    rows = [row(params["emb_ln_g"]), row(params["emb_ln_b"]),
            row(params["pool_b"]), row(params["cls_w"]), row(params["cls_b"])]
    for l in range(L):
        rows += [row(params["bqkv"][l]), row(params["bo"][l]),
                 row(params["ln1_g"][l]), row(params["ln1_b"][l]),
                 row(params["b1"][l]), row(params["b2"][l]),
                 row(params["ln2_g"][l]), row(params["ln2_b"][l])]
    vecs = jnp.concatenate(rows, axis=0)                                       # (NV, 3H) f32
    return w_a, w_b, vecs


# -------------------- forward pass --------------------
def text_complexity_regressor(params, input_ids, attention_mask):
    """input_ids: (B,S) int32, attention_mask: (B,S) int32 -> logits (B,1) float32."""
    # TODO(synk): embedding gather (jnp.take) kept in plain JAX; no clean small-scale Pallas gather.
    emb = (jnp.take(params["word_emb"], input_ids, axis=0)
           + params["pos_emb"][:S][None, :, :]
           + params["type_emb"][0][None, None, :])                      # token_type_ids = 0
    emb = emb.reshape(B * S, H)
    # additive mask precomputed once (keys-only masking, HF BERT semantics)
    mask_add = (1.0 - attention_mask.astype(jnp.float32)) * MASK_NEG    # (B, S)

    w_a, w_b, vecs = _pack_params(params)
    operands = (emb, mask_add, w_a, w_b, vecs)                          # 5 input DMAs total

    return pl.pallas_call(
        _bert_fused_kernel,
        out_shape=jax.ShapeDtypeStruct((B, 1), jnp.float32),
        in_specs=[_full_spec(op.shape) for op in operands],
        out_specs=_full_spec((B, 1)),
    )(*operands)


# -------------------- pure-JAX f32 reference (sanity tolerance check) --------------------
def _reference_forward(params, input_ids, attention_mask):
    def ln(x, g, b):
        mu = jnp.mean(x, -1, keepdims=True)
        var = jnp.mean((x - mu) ** 2, -1, keepdims=True)
        return (x - mu) / jnp.sqrt(var + LN_EPS) * g + b

    emb = (jnp.take(params["word_emb"], input_ids, axis=0)
           + params["pos_emb"][:S][None, :, :]
           + params["type_emb"][0][None, None, :])
    x = ln(emb.reshape(B * S, H), params["emb_ln_g"], params["emb_ln_b"])
    mask_add = (1.0 - attention_mask.astype(jnp.float32)) * MASK_NEG
    for l in range(L):
        qkv = x @ params["wqkv"][l] + params["bqkv"][l]
        q = qkv[:, :H].reshape(B, S, NH, DH).transpose(0, 2, 1, 3)
        k = qkv[:, H:2 * H].reshape(B, S, NH, DH).transpose(0, 2, 1, 3)
        v = qkv[:, 2 * H:].reshape(B, S, NH, DH).transpose(0, 2, 1, 3)
        s = jnp.einsum('bhqd,bhkd->bhqk', q, k) / math.sqrt(DH) + mask_add[:, None, None, :]
        p = jax.nn.softmax(s, axis=-1)
        c = jnp.einsum('bhqk,bhkd->bhqd', p, v).transpose(0, 2, 1, 3).reshape(B * S, H)
        x = ln(c @ params["wo"][l] + params["bo"][l] + x, params["ln1_g"][l], params["ln1_b"][l])
        hmid = x @ params["w1"][l] + params["b1"][l]
        hmid = 0.5 * hmid * (1.0 + jax.lax.erf(hmid / math.sqrt(2.0)))
        x = ln(hmid @ params["w2"][l] + params["b2"][l] + x, params["ln2_g"][l], params["ln2_b"][l])
    cls = x.reshape(B, S, H)[:, 0, :]
    pooled = jnp.tanh(cls @ params["pool_w"] + params["pool_b"])
    return jnp.sum(pooled * params["cls_w"], axis=-1, keepdims=True) + params["cls_b"]


if __name__ == "__main__":
    key = jax.random.PRNGKey(0)
    pkey, ikey = jax.random.split(key)
    params = init_params(pkey)

    input_ids = jax.random.randint(ikey, (B, S), 0, VOCAB, dtype=jnp.int32)
    # mask out the last 2 tokens of the second example to exercise the attention mask
    attention_mask = jnp.ones((B, S), dtype=jnp.int32).at[1, -2:].set(0)

    logits = jax.jit(text_complexity_regressor)(params, input_ids, attention_mask)
    logits = jax.block_until_ready(logits)
    assert logits.shape == (B, 1) and logits.dtype == jnp.float32
    assert bool(jnp.all(jnp.isfinite(logits)))

    # tolerance accounts for bf16 MXU inputs, approx reciprocal and tanh-approx GELU
    ref = _reference_forward(params, input_ids, attention_mask)
    assert bool(jnp.allclose(logits, ref, rtol=2e-2, atol=5e-3)), (logits, ref)

    print("KERNEL_OK")
</pallas_src>

<mosaic_0001>
module attributes {stable_mosaic.version = 11 : i64} {
  func.func @_bert_fused_kernel(%arg0: memref<16x32xf32, #tpu.memory_space<vmem>>, %arg1: memref<2x8xf32, #tpu.memory_space<vmem>>, %arg2: memref<2x32x192xbf16, #tpu.memory_space<vmem>>, %arg3: memref<3x64x32xbf16, #tpu.memory_space<vmem>>, %arg4: memref<21x96xf32, #tpu.memory_space<vmem>>, %arg5: memref<2x1xf32, #tpu.memory_space<vmem>>) attributes {dimension_semantics = [], scalar_prefetch = 0 : i64, scratch_operands = 0 : i64, tpu.core_type = #tpu.core_type<tc>} {
    %c0 = arith.constant 0 : index
    %c0_0 = arith.constant 0 : index
    %0 = vector.load %arg0[%c0, %c0_0] : memref<16x32xf32, #tpu.memory_space<vmem>>, vector<16x32xf32>
    %c0_1 = arith.constant 0 : index
    %c0_2 = arith.constant 0 : index
    %1 = vector.load %arg4[%c0_1, %c0_2] : memref<21x96xf32, #tpu.memory_space<vmem>>, vector<1x32xf32>
    %c1 = arith.constant 1 : index
    %c0_3 = arith.constant 0 : index
    %2 = vector.load %arg4[%c1, %c0_3] : memref<21x96xf32, #tpu.memory_space<vmem>>, vector<1x32xf32>
    %cst = arith.constant dense<0.000000e+00> : vector<16xf32>
    %3 = vector.multi_reduction <add>, %0, %cst [1] : vector<16x32xf32> to vector<16xf32>
    %4 = vector.shape_cast %3 : vector<16xf32> to vector<16x1xf32>
    %cst_4 = arith.constant 3.200000e+01 : f32
    %5 = vector.broadcast %cst_4 : f32 to vector<16x1xf32>
    %6 = arith.divf %4, %5 : vector<16x1xf32>
    %7 = vector.broadcast %6 : vector<16x1xf32> to vector<16x32xf32>
    %8 = arith.subf %0, %7 : vector<16x32xf32>
    %9 = arith.mulf %8, %8 : vector<16x32xf32>
    %cst_5 = arith.constant dense<0.000000e+00> : vector<16xf32>
    %10 = vector.multi_reduction <add>, %9, %cst_5 [1] : vector<16x32xf32> to vector<16xf32>
    %11 = vector.shape_cast %10 : vector<16xf32> to vector<16x1xf32>
    %cst_6 = arith.constant 3.200000e+01 : f32
    %12 = vector.broadcast %cst_6 : f32 to vector<16x1xf32>
    %13 = arith.divf %11, %12 : vector<16x1xf32>
    %cst_7 = arith.constant 9.99999996E-13 : f32
    %14 = vector.broadcast %cst_7 : f32 to vector<16x1xf32>
    %15 = arith.addf %13, %14 : vector<16x1xf32>
    %16 = math.rsqrt %15 : vector<16x1xf32>
    %17 = vector.broadcast %16 : vector<16x1xf32> to vector<16x32xf32>
    %18 = arith.mulf %8, %17 : vector<16x32xf32>
    %19 = vector.broadcast %1 : vector<1x32xf32> to vector<16x32xf32>
    %20 = arith.mulf %18, %19 : vector<16x32xf32>
    %21 = vector.broadcast %2 : vector<1x32xf32> to vector<16x32xf32>
    %22 = arith.addf %20, %21 : vector<16x32xf32>
    %c0_8 = arith.constant 0 : index
    %c0_9 = arith.constant 0 : index
    %23 = vector.load %arg1[%c0_8, %c0_9] : memref<2x8xf32, #tpu.memory_space<vmem>>, vector<2x8xf32>
    %24 = vector.shape_cast %23 : vector<2x8xf32> to vector<2x1x8xf32>
    %25 = vector.shape_cast %24 : vector<2x1x8xf32> to vector<2x1x8xf32>
    %26 = vector.broadcast %25 : vector<2x1x8xf32> to vector<2x8x8xf32>
    %c0_10 = arith.constant 0 : index
    %c0_11 = arith.constant 0 : index
    %c0_12 = arith.constant 0 : index
    %27 = vector.load %arg2[%c0_10, %c0_11, %c0_12] : memref<2x32x192xbf16, #tpu.memory_space<vmem>>, vector<1x32x192xbf16>
    %28 = vector.shape_cast %27 : vector<1x32x192xbf16> to vector<32x192xbf16>
    %29 = vector.extract_strided_slice %28 {offsets = [0, 0], sizes = [32, 96], strides = [1, 1]} : vector<32x192xbf16> to vector<32x96xbf16>
    %30 = vector.extract_strided_slice %28 {offsets = [0, 96], sizes = [32, 32], strides = [1, 1]} : vector<32x192xbf16> to vector<32x32xbf16>
    %31 = vector.extract_strided_slice %28 {offsets = [0, 128], sizes = [32, 64], strides = [1, 1]} : vector<32x192xbf16> to vector<32x64xbf16>
    %32 = arith.truncf %22 : vector<16x32xf32> to vector<16x32xbf16>
    %cst_13 = arith.constant dense<0.000000e+00> : vector<16x96xf32>
    %33 = tpu.matmul %32, %29, %cst_13 {dimension_numbers = #tpu.dot_dimension_numbers<[1], [0], [0], [1], [0, 0, 1, 1], [], []>} : vector<16x32xbf16>, vector<32x96xbf16>, vector<16x96xf32> -> vector<16x96xf32>
    %c5 = arith.constant 5 : index
    %c0_14 = arith.constant 0 : index
    %34 = vector.load %arg4[%c5, %c0_14] : memref<21x96xf32, #tpu.memory_space<vmem>>, vector<1x96xf32>
    %35 = vector.broadcast %34 : vector<1x96xf32> to vector<16x96xf32>
    %36 = arith.addf %33, %35 : vector<16x96xf32>
    %37 = vector.extract_strided_slice %36 {offsets = [0, 0], sizes = [16, 16], strides = [1, 1]} : vector<16x96xf32> to vector<16x16xf32>
    %38 = vector.shape_cast %37 : vector<16x16xf32> to vector<2x8x16xf32>
    %39 = vector.extract_strided_slice %36 {offsets = [0, 32], sizes = [16, 16], strides = [1, 1]} : vector<16x96xf32> to vector<16x16xf32>
    %40 = vector.shape_cast %39 : vector<16x16xf32> to vector<2x8x16xf32>
    %41 = vector.extract_strided_slice %36 {offsets = [0, 64], sizes = [16, 16], strides = [1, 1]} : vector<16x96xf32> to vector<16x16xf32>
    %42 = vector.shape_cast %41 : vector<16x16xf32> to vector<2x8x16xf32>
    %43 = arith.truncf %38 : vector<2x8x16xf32> to vector<2x8x16xbf16>
    %44 = arith.truncf %40 : vector<2x8x16xf32> to vector<2x8x16xbf16>
    "tpu.trace_start"() <{level = 10 : i32, message = "bqd,bkd->bqk"}> : () -> ()
    %cst_15 = arith.constant dense<0.000000e+00> : vector<2x8x8xf32>
    %45 = tpu.matmul %43, %44, %cst_15 {dimension_numbers = #tpu.dot_dimension_numbers<[2], [2], [1], [1], [0, 0, 0, 1, 1, 1], [0], [0]>} : vector<2x8x16xbf16>, vector<2x8x16xbf16>, vector<2x8x8xf32> -> vector<2x8x8xf32>
    "tpu.trace_stop"() : () -> ()
    %cst_16 = arith.constant 2.500000e-01 : f32
    %46 = vector.broadcast %cst_16 : f32 to vector<2x8x8xf32>
    %47 = arith.mulf %45, %46 : vector<2x8x8xf32>
    %48 = arith.addf %47, %26 : vector<2x8x8xf32>
    %cst_17 = arith.constant dense<0xFF800000> : vector<2x8xf32>
    %49 = vector.multi_reduction <maximumf>, %48, %cst_17 [2] : vector<2x8x8xf32> to vector<2x8xf32>
    %50 = vector.shape_cast %49 : vector<2x8xf32> to vector<2x8x1xf32>
    %51 = vector.broadcast %50 : vector<2x8x1xf32> to vector<2x8x8xf32>
    %52 = arith.subf %48, %51 : vector<2x8x8xf32>
    %53 = math.exp %52 : vector<2x8x8xf32>
    %cst_18 = arith.constant dense<0.000000e+00> : vector<2x8xf32>
    %54 = vector.multi_reduction <add>, %53, %cst_18 [2] : vector<2x8x8xf32> to vector<2x8xf32>
    %55 = vector.shape_cast %54 : vector<2x8xf32> to vector<2x8x1xf32>
    %56 = tpu.reciprocal %55 {approx = true} : vector<2x8x1xf32> -> vector<2x8x1xf32>
    %57 = vector.broadcast %56 : vector<2x8x1xf32> to vector<2x8x8xf32>
    %58 = arith.mulf %53, %57 : vector<2x8x8xf32>
    %59 = arith.truncf %58 : vector<2x8x8xf32> to vector<2x8x8xbf16>
    %60 = arith.truncf %42 : vector<2x8x16xf32> to vector<2x8x16xbf16>
    "tpu.trace_start"() <{level = 10 : i32, message = "bqk,bkd->bqd"}> : () -> ()
    %cst_19 = arith.constant dense<0.000000e+00> : vector<2x8x16xf32>
    %61 = tpu.matmul %59, %60, %cst_19 {dimension_numbers = #tpu.dot_dimension_numbers<[2], [1], [1], [2], [0, 0, 0, 1, 1, 2], [0], [0]>} : vector<2x8x8xbf16>, vector<2x8x16xbf16>, vector<2x8x16xf32> -> vector<2x8x16xf32>
    "tpu.trace_stop"() : () -> ()
    %62 = vector.shape_cast %61 : vector<2x8x16xf32> to vector<16x16xf32>
    %63 = vector.extract_strided_slice %30 {offsets = [0, 0], sizes = [16, 32], strides = [1, 1]} : vector<32x32xbf16> to vector<16x32xbf16>
    %64 = arith.truncf %62 : vector<16x16xf32> to vector<16x16xbf16>
    %cst_20 = arith.constant dense<0.000000e+00> : vector<16x32xf32>
    %65 = tpu.matmul %64, %63, %cst_20 {dimension_numbers = #tpu.dot_dimension_numbers<[1], [0], [0], [1], [0, 0, 1, 1], [], []>} : vector<16x16xbf16>, vector<16x32xbf16>, vector<16x32xf32> -> vector<16x32xf32>
    %66 = vector.extract_strided_slice %36 {offsets = [0, 16], sizes = [16, 16], strides = [1, 1]} : vector<16x96xf32> to vector<16x16xf32>
    %67 = vector.shape_cast %66 : vector<16x16xf32> to vector<2x8x16xf32>
    %68 = vector.extract_strided_slice %36 {offsets = [0, 48], sizes = [16, 16], strides = [1, 1]} : vector<16x96xf32> to vector<16x16xf32>
    %69 = vector.shape_cast %68 : vector<16x16xf32> to vector<2x8x16xf32>
    %70 = vector.extract_strided_slice %36 {offsets = [0, 80], sizes = [16, 16], strides = [1, 1]} : vector<16x96xf32> to vector<16x16xf32>
    %71 = vector.shape_cast %70 : vector<16x16xf32> to vector<2x8x16xf32>
    %72 = arith.truncf %67 : vector<2x8x16xf32> to vector<2x8x16xbf16>
    %73 = arith.truncf %69 : vector<2x8x16xf32> to vector<2x8x16xbf16>
    "tpu.trace_start"() <{level = 10 : i32, message = "bqd,bkd->bqk"}> : () -> ()
    %cst_21 = arith.constant dense<0.000000e+00> : vector<2x8x8xf32>
    %74 = tpu.matmul %72, %73, %cst_21 {dimension_numbers = #tpu.dot_dimension_numbers<[2], [2], [1], [1], [0, 0, 0, 1, 1, 1], [0], [0]>} : vector<2x8x16xbf16>, vector<2x8x16xbf16>, vector<2x8x8xf32> -> vector<2x8x8xf32>
    "tpu.trace_stop"() : () -> ()
    %cst_22 = arith.constant 2.500000e-01 : f32
    %75 = vector.broadcast %cst_22 : f32 to vector<2x8x8xf32>
    %76 = arith.mulf %74, %75 : vector<2x8x8xf32>
    %77 = arith.addf %76, %26 : vector<2x8x8xf32>
    %cst_23 = arith.constant dense<0xFF800000> : vector<2x8xf32>
    %78 = vector.multi_reduction <maximumf>, %77, %cst_23 [2] : vector<2x8x8xf32> to vector<2x8xf32>
    %79 = vector.shape_cast %78 : vector<2x8xf32> to vector<2x8x1xf32>
    %80 = vector.broadcast %79 : vector<2x8x1xf32> to vector<2x8x8xf32>
    %81 = arith.subf %77, %80 : vector<2x8x8xf32>
    %82 = math.exp %81 : vector<2x8x8xf32>
    %cst_24 = arith.constant dense<0.000000e+00> : vector<2x8xf32>
    %83 = vector.multi_reduction <add>, %82, %cst_24 [2] : vector<2x8x8xf32> to vector<2x8xf32>
    %84 = vector.shape_cast %83 : vector<2x8xf32> to vector<2x8x1xf32>
    %85 = tpu.reciprocal %84 {approx = true} : vector<2x8x1xf32> -> vector<2x8x1xf32>
    %86 = vector.broadcast %85 : vector<2x8x1xf32> to vector<2x8x8xf32>
    %87 = arith.mulf %82, %86 : vector<2x8x8xf32>
    %88 = arith.truncf %87 : vector<2x8x8xf32> to vector<2x8x8xbf16>
    %89 = arith.truncf %71 : vector<2x8x16xf32> to vector<2x8x16xbf16>
    "tpu.trace_start"() <{level = 10 : i32, message = "bqk,bkd->bqd"}> : () -> ()
    %cst_25 = arith.constant dense<0.000000e+00> : vector<2x8x16xf32>
    %90 = tpu.matmul %88, %89, %cst_25 {dimension_numbers = #tpu.dot_dimension_numbers<[2], [1], [1], [2], [0, 0, 0, 1, 1, 2], [0], [0]>} : vector<2x8x8xbf16>, vector<2x8x16xbf16>, vector<2x8x16xf32> -> vector<2x8x16xf32>
    "tpu.trace_stop"() : () -> ()
    %91 = vector.shape_cast %90 : vector<2x8x16xf32> to vector<16x16xf32>
    %92 = vector.extract_strided_slice %30 {offsets = [16, 0], sizes = [16, 32], strides = [1, 1]} : vector<32x32xbf16> to vector<16x32xbf16>
    %93 = arith.truncf %91 : vector<16x16xf32> to vector<16x16xbf16>
    %cst_26 = arith.constant dense<0.000000e+00> : vector<16x32xf32>
    %94 = tpu.matmul %93, %92, %cst_26 {dimension_numbers = #tpu.dot_dimension_numbers<[1], [0], [0], [1], [0, 0, 1, 1], [], []>} : vector<16x16xbf16>, vector<16x32xbf16>, vector<16x32xf32> -> vector<16x32xf32>
    %95 = arith.addf %65, %94 : vector<16x32xf32>
    %c6 = arith.constant 6 : index
    %c0_27 = arith.constant 0 : index
    %96 = vector.load %arg4[%c6, %c0_27] : memref<21x96xf32, #tpu.memory_space<vmem>>, vector<1x32xf32>
    %97 = vector.broadcast %96 : vector<1x32xf32> to vector<16x32xf32>
    %98 = arith.addf %95, %97 : vector<16x32xf32>
    %99 = arith.addf %98, %22 : vector<16x32xf32>
    %c7 = arith.constant 7 : index
    %c0_28 = arith.constant 0 : index
    %100 = vector.load %arg4[%c7, %c0_28] : memref<21x96xf32, #tpu.memory_space<vmem>>, vector<1x32xf32>
    %c8 = arith.constant 8 : index
    %c0_29 = arith.constant 0 : index
    %101 = vector.load %arg4[%c8, %c0_29] : memref<21x96xf32, #tpu.memory_space<vmem>>, vector<1x32xf32>
    %cst_30 = arith.constant dense<0.000000e+00> : vector<16xf32>
    %102 = vector.multi_reduction <add>, %99, %cst_30 [1] : vector<16x32xf32> to vector<16xf32>
    %103 = vector.shape_cast %102 : vector<16xf32> to vector<16x1xf32>
    %cst_31 = arith.constant 3.200000e+01 : f32
    %104 = vector.broadcast %cst_31 : f32 to vector<16x1xf32>
    %105 = arith.divf %103, %104 : vector<16x1xf32>
    %106 = vector.broadcast %105 : vector<16x1xf32> to vector<16x32xf32>
    %107 = arith.subf %99, %106 : vector<16x32xf32>
    %108 = arith.mulf %107, %107 : vector<16x32xf32>
    %cst_32 = arith.constant dense<0.000000e+00> : vector<16xf32>
    %109 = vector.multi_reduction <add>, %108, %cst_32 [1] : vector<16x32xf32> to vector<16xf32>
    %110 = vector.shape_cast %109 : vector<16xf32> to vector<16x1xf32>
    %cst_33 = arith.constant 3.200000e+01 : f32
    %111 = vector.broadcast %cst_33 : f32 to vector<16x1xf32>
    %112 = arith.divf %110, %111 : vector<16x1xf32>
    %cst_34 = arith.constant 9.99999996E-13 : f32
    %113 = vector.broadcast %cst_34 : f32 to vector<16x1xf32>
    %114 = arith.addf %112, %113 : vector<16x1xf32>
    %115 = math.rsqrt %114 : vector<16x1xf32>
    %116 = vector.broadcast %115 : vector<16x1xf32> to vector<16x32xf32>
    %117 = arith.mulf %107, %116 : vector<16x32xf32>
    %118 = vector.broadcast %100 : vector<1x32xf32> to vector<16x32xf32>
    %119 = arith.mulf %117, %118 : vector<16x32xf32>
    %120 = vector.broadcast %101 : vector<1x32xf32> to vector<16x32xf32>
    %121 = arith.addf %119, %120 : vector<16x32xf32>
    %122 = arith.truncf %121 : vector<16x32xf32> to vector<16x32xbf16>
    %cst_35 = arith.constant dense<0.000000e+00> : vector<16x64xf32>
    %123 = tpu.matmul %122, %31, %cst_35 {dimension_numbers = #tpu.dot_dimension_numbers<[1], [0], [0], [1], [0, 0, 1, 1], [], []>} : vector<16x32xbf16>, vector<32x64xbf16>, vector<16x64xf32> -> vector<16x64xf32>
    %c9 = arith.constant 9 : index
    %c0_36 = arith.constant 0 : index
    %124 = vector.load %arg4[%c9, %c0_36] : memref<21x96xf32, #tpu.memory_space<vmem>>, vector<1x64xf32>
    %125 = vector.broadcast %124 : vector<1x64xf32> to vector<16x64xf32>
    %126 = arith.addf %123, %125 : vector<16x64xf32>
    %cst_37 = arith.constant 5.000000e-01 : f32
    %127 = vector.broadcast %cst_37 : f32 to vector<16x64xf32>
    %128 = arith.mulf %127, %126 : vector<16x64xf32>
    %cst_38 = arith.constant 4.471500e-02 : f32
    %129 = vector.broadcast %cst_38 : f32 to vector<16x64xf32>
    %130 = arith.mulf %129, %126 : vector<16x64xf32>
    %131 = arith.mulf %130, %126 : vector<16x64xf32>
    %132 = arith.mulf %131, %126 : vector<16x64xf32>
    %133 = arith.addf %126, %132 : vector<16x64xf32>
    %cst_39 = arith.constant 0.797884583 : f32
    %134 = vector.broadcast %cst_39 : f32 to vector<16x64xf32>
    %135 = arith.mulf %134, %133 : vector<16x64xf32>
    %136 = math.tanh %135 : vector<16x64xf32>
    %cst_40 = arith.constant 1.000000e+00 : f32
    %137 = vector.broadcast %cst_40 : f32 to vector<16x64xf32>
    %138 = arith.addf %137, %136 : vector<16x64xf32>
    %139 = arith.mulf %128, %138 : vector<16x64xf32>
    %c0_41 = arith.constant 0 : index
    %c0_42 = arith.constant 0 : index
    %c0_43 = arith.constant 0 : index
    %140 = vector.load %arg3[%c0_41, %c0_42, %c0_43] : memref<3x64x32xbf16, #tpu.memory_space<vmem>>, vector<1x64x32xbf16>
    %141 = vector.shape_cast %140 : vector<1x64x32xbf16> to vector<64x32xbf16>
    %142 = arith.truncf %139 : vector<16x64xf32> to vector<16x64xbf16>
    %cst_44 = arith.constant dense<0.000000e+00> : vector<16x32xf32>
    %143 = tpu.matmul %142, %141, %cst_44 {dimension_numbers = #tpu.dot_dimension_numbers<[1], [0], [0], [1], [0, 0, 1, 1], [], []>} : vector<16x64xbf16>, vector<64x32xbf16>, vector<16x32xf32> -> vector<16x32xf32>
    %c10 = arith.constant 10 : index
    %c0_45 = arith.constant 0 : index
    %144 = vector.load %arg4[%c10, %c0_45] : memref<21x96xf32, #tpu.memory_space<vmem>>, vector<1x32xf32>
    %145 = vector.broadcast %144 : vector<1x32xf32> to vector<16x32xf32>
    %146 = arith.addf %143, %145 : vector<16x32xf32>
    %147 = arith.addf %146, %121 : vector<16x32xf32>
    %c11 = arith.constant 11 : index
    %c0_46 = arith.constant 0 : index
    %148 = vector.load %arg4[%c11, %c0_46] : memref<21x96xf32, #tpu.memory_space<vmem>>, vector<1x32xf32>
    %c12 = arith.constant 12 : index
    %c0_47 = arith.constant 0 : index
    %149 = vector.load %arg4[%c12, %c0_47] : memref<21x96xf32, #tpu.memory_space<vmem>>, vector<1x32xf32>
    %cst_48 = arith.constant dense<0.000000e+00> : vector<16xf32>
    %150 = vector.multi_reduction <add>, %147, %cst_48 [1] : vector<16x32xf32> to vector<16xf32>
    %151 = vector.shape_cast %150 : vector<16xf32> to vector<16x1xf32>
    %cst_49 = arith.constant 3.200000e+01 : f32
    %152 = vector.broadcast %cst_49 : f32 to vector<16x1xf32>
    %153 = arith.divf %151, %152 : vector<16x1xf32>
    %154 = vector.broadcast %153 : vector<16x1xf32> to vector<16x32xf32>
    %155 = arith.subf %147, %154 : vector<16x32xf32>
    %156 = arith.mulf %155, %155 : vector<16x32xf32>
    %cst_50 = arith.constant dense<0.000000e+00> : vector<16xf32>
    %157 = vector.multi_reduction <add>, %156, %cst_50 [1] : vector<16x32xf32> to vector<16xf32>
    %158 = vector.shape_cast %157 : vector<16xf32> to vector<16x1xf32>
    %cst_51 = arith.constant 3.200000e+01 : f32
    %159 = vector.broadcast %cst_51 : f32 to vector<16x1xf32>
    %160 = arith.divf %158, %159 : vector<16x1xf32>
    %cst_52 = arith.constant 9.99999996E-13 : f32
    %161 = vector.broadcast %cst_52 : f32 to vector<16x1xf32>
    %162 = arith.addf %160, %161 : vector<16x1xf32>
    %163 = math.rsqrt %162 : vector<16x1xf32>
    %164 = vector.broadcast %163 : vector<16x1xf32> to vector<16x32xf32>
    %165 = arith.mulf %155, %164 : vector<16x32xf32>
    %166 = vector.broadcast %148 : vector<1x32xf32> to vector<16x32xf32>
    %167 = arith.mulf %165, %166 : vector<16x32xf32>
    %168 = vector.broadcast %149 : vector<1x32xf32> to vector<16x32xf32>
    %169 = arith.addf %167, %168 : vector<16x32xf32>
    %c1_53 = arith.constant 1 : index
    %c0_54 = arith.constant 0 : index
    %c0_55 = arith.constant 0 : index
    %170 = vector.load %arg2[%c1_53, %c0_54, %c0_55] : memref<2x32x192xbf16, #tpu.memory_space<vmem>>, vector<1x32x192xbf16>
    %171 = vector.shape_cast %170 : vector<1x32x192xbf16> to vector<32x192xbf16>
    %172 = vector.extract_strided_slice %171 {offsets = [0, 0], sizes = [32, 96], strides = [1, 1]} : vector<32x192xbf16> to vector<32x96xbf16>
    %173 = vector.extract_strided_slice %171 {offsets = [0, 96], sizes = [32, 32], strides = [1, 1]} : vector<32x192xbf16> to vector<32x32xbf16>
    %174 = vector.extract_strided_slice %171 {offsets = [0, 128], sizes = [32, 64], strides = [1, 1]} : vector<32x192xbf16> to vector<32x64xbf16>
    %175 = arith.truncf %169 : vector<16x32xf32> to vector<16x32xbf16>
    %cst_56 = arith.constant dense<0.000000e+00> : vector<16x96xf32>
    %176 = tpu.matmul %175, %172, %cst_56 {dimension_numbers = #tpu.dot_dimension_numbers<[1], [0], [0], [1], [0, 0, 1, 1], [], []>} : vector<16x32xbf16>, vector<32x96xbf16>, vector<16x96xf32> -> vector<16x96xf32>
    %c13 = arith.constant 13 : index
    %c0_57 = arith.constant 0 : index
    %177 = vector.load %arg4[%c13, %c0_57] : memref<21x96xf32, #tpu.memory_space<vmem>>, vector<1x96xf32>
    %178 = vector.broadcast %177 : vector<1x96xf32> to vector<16x96xf32>
    %179 = arith.addf %176, %178 : vector<16x96xf32>
    %180 = vector.extract_strided_slice %179 {offsets = [0, 0], sizes = [16, 16], strides = [1, 1]} : vector<16x96xf32> to vector<16x16xf32>
    %181 = vector.shape_cast %180 : vector<16x16xf32> to vector<2x8x16xf32>
    %182 = vector.extract_strided_slice %179 {offsets = [0, 32], sizes = [16, 16], strides = [1, 1]} : vector<16x96xf32> to vector<16x16xf32>
    %183 = vector.shape_cast %182 : vector<16x16xf32> to vector<2x8x16xf32>
    %184 = vector.extract_strided_slice %179 {offsets = [0, 64], sizes = [16, 16], strides = [1, 1]} : vector<16x96xf32> to vector<16x16xf32>
    %185 = vector.shape_cast %184 : vector<16x16xf32> to vector<2x8x16xf32>
    %186 = arith.truncf %181 : vector<2x8x16xf32> to vector<2x8x16xbf16>
    %187 = arith.truncf %183 : vector<2x8x16xf32> to vector<2x8x16xbf16>
    "tpu.trace_start"() <{level = 10 : i32, message = "bqd,bkd->bqk"}> : () -> ()
    %cst_58 = arith.constant dense<0.000000e+00> : vector<2x8x8xf32>
    %188 = tpu.matmul %186, %187, %cst_58 {dimension_numbers = #tpu.dot_dimension_numbers<[2], [2], [1], [1], [0, 0, 0, 1, 1, 1], [0], [0]>} : vector<2x8x16xbf16>, vector<2x8x16xbf16>, vector<2x8x8xf32> -> vector<2x8x8xf32>
    "tpu.trace_stop"() : () -> ()
    %cst_59 = arith.constant 2.500000e-01 : f32
    %189 = vector.broadcast %cst_59 : f32 to vector<2x8x8xf32>
    %190 = arith.mulf %188, %189 : vector<2x8x8xf32>
    %191 = arith.addf %190, %26 : vector<2x8x8xf32>
    %cst_60 = arith.constant dense<0xFF800000> : vector<2x8xf32>
    %192 = vector.multi_reduction <maximumf>, %191, %cst_60 [2] : vector<2x8x8xf32> to vector<2x8xf32>
    %193 = vector.shape_cast %192 : vector<2x8xf32> to vector<2x8x1xf32>
    %194 = vector.broadcast %193 : vector<2x8x1xf32> to vector<2x8x8xf32>
    %195 = arith.subf %191, %194 : vector<2x8x8xf32>
    %196 = math.exp %195 : vector<2x8x8xf32>
    %cst_61 = arith.constant dense<0.000000e+00> : vector<2x8xf32>
    %197 = vector.multi_reduction <add>, %196, %cst_61 [2] : vector<2x8x8xf32> to vector<2x8xf32>
    %198 = vector.shape_cast %197 : vector<2x8xf32> to vector<2x8x1xf32>
    %199 = tpu.reciprocal %198 {approx = true} : vector<2x8x1xf32> -> vector<2x8x1xf32>
    %200 = vector.broadcast %199 : vector<2x8x1xf32> to vector<2x8x8xf32>
    %201 = arith.mulf %196, %200 : vector<2x8x8xf32>
    %202 = arith.truncf %201 : vector<2x8x8xf32> to vector<2x8x8xbf16>
    %203 = arith.truncf %185 : vector<2x8x16xf32> to vector<2x8x16xbf16>
    "tpu.trace_start"() <{level = 10 : i32, message = "bqk,bkd->bqd"}> : () -> ()
    %cst_62 = arith.constant dense<0.000000e+00> : vector<2x8x16xf32>
    %204 = tpu.matmul %202, %203, %cst_62 {dimension_numbers = #tpu.dot_dimension_numbers<[2], [1], [1], [2], [0, 0, 0, 1, 1, 2], [0], [0]>} : vector<2x8x8xbf16>, vector<2x8x16xbf16>, vector<2x8x16xf32> -> vector<2x8x16xf32>
    "tpu.trace_stop"() : () -> ()
    %205 = vector.shape_cast %204 : vector<2x8x16xf32> to vector<16x16xf32>
    %206 = vector.extract_strided_slice %173 {offsets = [0, 0], sizes = [16, 32], strides = [1, 1]} : vector<32x32xbf16> to vector<16x32xbf16>
    %207 = arith.truncf %205 : vector<16x16xf32> to vector<16x16xbf16>
    %cst_63 = arith.constant dense<0.000000e+00> : vector<16x32xf32>
    %208 = tpu.matmul %207, %206, %cst_63 {dimension_numbers = #tpu.dot_dimension_numbers<[1], [0], [0], [1], [0, 0, 1, 1], [], []>} : vector<16x16xbf16>, vector<16x32xbf16>, vector<16x32xf32> -> vector<16x32xf32>
    %209 = vector.extract_strided_slice %179 {offsets = [0, 16], sizes = [16, 16], strides = [1, 1]} : vector<16x96xf32> to vector<16x16xf32>
    %210 = vector.shape_cast %209 : vector<16x16xf32> to vector<2x8x16xf32>
    %211 = vector.extract_strided_slice %179 {offsets = [0, 48], sizes = [16, 16], strides = [1, 1]} : vector<16x96xf32> to vector<16x16xf32>
    %212 = vector.shape_cast %211 : vector<16x16xf32> to vector<2x8x16xf32>
    %213 = vector.extract_strided_slice %179 {offsets = [0, 80], sizes = [16, 16], strides = [1, 1]} : vector<16x96xf32> to vector<16x16xf32>
    %214 = vector.shape_cast %213 : vector<16x16xf32> to vector<2x8x16xf32>
    %215 = arith.truncf %210 : vector<2x8x16xf32> to vector<2x8x16xbf16>
    %216 = arith.truncf %212 : vector<2x8x16xf32> to vector<2x8x16xbf16>
    "tpu.trace_start"() <{level = 10 : i32, message = "bqd,bkd->bqk"}> : () -> ()
    %cst_64 = arith.constant dense<0.000000e+00> : vector<2x8x8xf32>
    %217 = tpu.matmul %215, %216, %cst_64 {dimension_numbers = #tpu.dot_dimension_numbers<[2], [2], [1], [1], [0, 0, 0, 1, 1, 1], [0], [0]>} : vector<2x8x16xbf16>, vector<2x8x16xbf16>, vector<2x8x8xf32> -> vector<2x8x8xf32>
    "tpu.trace_stop"() : () -> ()
    %cst_65 = arith.constant 2.500000e-01 : f32
    %218 = vector.broadcast %cst_65 : f32 to vector<2x8x8xf32>
    %219 = arith.mulf %217, %218 : vector<2x8x8xf32>
    %220 = arith.addf %219, %26 : vector<2x8x8xf32>
    %cst_66 = arith.constant dense<0xFF800000> : vector<2x8xf32>
    %221 = vector.multi_reduction <maximumf>, %220, %cst_66 [2] : vector<2x8x8xf32> to vector<2x8xf32>
    %222 = vector.shape_cast %221 : vector<2x8xf32> to vector<2x8x1xf32>
    %223 = vector.broadcast %222 : vector<2x8x1xf32> to vector<2x8x8xf32>
    %224 = arith.subf %220, %223 : vector<2x8x8xf32>
    %225 = math.exp %224 : vector<2x8x8xf32>
    %cst_67 = arith.constant dense<0.000000e+00> : vector<2x8xf32>
    %226 = vector.multi_reduction <add>, %225, %cst_67 [2] : vector<2x8x8xf32> to vector<2x8xf32>
    %227 = vector.shape_cast %226 : vector<2x8xf32> to vector<2x8x1xf32>
    %228 = tpu.reciprocal %227 {approx = true} : vector<2x8x1xf32> -> vector<2x8x1xf32>
    %229 = vector.broadcast %228 : vector<2x8x1xf32> to vector<2x8x8xf32>
    %230 = arith.mulf %225, %229 : vector<2x8x8xf32>
    %231 = arith.truncf %230 : vector<2x8x8xf32> to vector<2x8x8xbf16>
    %232 = arith.truncf %214 : vector<2x8x16xf32> to vector<2x8x16xbf16>
    "tpu.trace_start"() <{level = 10 : i32, message = "bqk,bkd->bqd"}> : () -> ()
    %cst_68 = arith.constant dense<0.000000e+00> : vector<2x8x16xf32>
    %233 = tpu.matmul %231, %232, %cst_68 {dimension_numbers = #tpu.dot_dimension_numbers<[2], [1], [1], [2], [0, 0, 0, 1, 1, 2], [0], [0]>} : vector<2x8x8xbf16>, vector<2x8x16xbf16>, vector<2x8x16xf32> -> vector<2x8x16xf32>
    "tpu.trace_stop"() : () -> ()
    %234 = vector.shape_cast %233 : vector<2x8x16xf32> to vector<16x16xf32>
    %235 = vector.extract_strided_slice %173 {offsets = [16, 0], sizes = [16, 32], strides = [1, 1]} : vector<32x32xbf16> to vector<16x32xbf16>
    %236 = arith.truncf %234 : vector<16x16xf32> to vector<16x16xbf16>
    %cst_69 = arith.constant dense<0.000000e+00> : vector<16x32xf32>
    %237 = tpu.matmul %236, %235, %cst_69 {dimension_numbers = #tpu.dot_dimension_numbers<[1], [0], [0], [1], [0, 0, 1, 1], [], []>} : vector<16x16xbf16>, vector<16x32xbf16>, vector<16x32xf32> -> vector<16x32xf32>
    %238 = arith.addf %208, %237 : vector<16x32xf32>
    %c14 = arith.constant 14 : index
    %c0_70 = arith.constant 0 : index
    %239 = vector.load %arg4[%c14, %c0_70] : memref<21x96xf32, #tpu.memory_space<vmem>>, vector<1x32xf32>
    %240 = vector.broadcast %239 : vector<1x32xf32> to vector<16x32xf32>
    %241 = arith.addf %238, %240 : vector<16x32xf32>
    %242 = arith.addf %241, %169 : vector<16x32xf32>
    %c15 = arith.constant 15 : index
    %c0_71 = arith.constant 0 : index
    %243 = vector.load %arg4[%c15, %c0_71] : memref<21x96xf32, #tpu.memory_space<vmem>>, vector<1x32xf32>
    %c16 = arith.constant 16 : index
    %c0_72 = arith.constant 0 : index
    %244 = vector.load %arg4[%c16, %c0_72] : memref<21x96xf32, #tpu.memory_space<vmem>>, vector<1x32xf32>
    %cst_73 = arith.constant dense<0.000000e+00> : vector<16xf32>
    %245 = vector.multi_reduction <add>, %242, %cst_73 [1] : vector<16x32xf32> to vector<16xf32>
    %246 = vector.shape_cast %245 : vector<16xf32> to vector<16x1xf32>
    %cst_74 = arith.constant 3.200000e+01 : f32
    %247 = vector.broadcast %cst_74 : f32 to vector<16x1xf32>
    %248 = arith.divf %246, %247 : vector<16x1xf32>
    %249 = vector.broadcast %248 : vector<16x1xf32> to vector<16x32xf32>
    %250 = arith.subf %242, %249 : vector<16x32xf32>
    %251 = arith.mulf %250, %250 : vector<16x32xf32>
    %cst_75 = arith.constant dense<0.000000e+00> : vector<16xf32>
    %252 = vector.multi_reduction <add>, %251, %cst_75 [1] : vector<16x32xf32> to vector<16xf32>
    %253 = vector.shape_cast %252 : vector<16xf32> to vector<16x1xf32>
    %cst_76 = arith.constant 3.200000e+01 : f32
    %254 = vector.broadcast %cst_76 : f32 to vector<16x1xf32>
    %255 = arith.divf %253, %254 : vector<16x1xf32>
    %cst_77 = arith.constant 9.99999996E-13 : f32
    %256 = vector.broadcast %cst_77 : f32 to vector<16x1xf32>
    %257 = arith.addf %255, %256 : vector<16x1xf32>
    %258 = math.rsqrt %257 : vector<16x1xf32>
    %259 = vector.broadcast %258 : vector<16x1xf32> to vector<16x32xf32>
    %260 = arith.mulf %250, %259 : vector<16x32xf32>
    %261 = vector.broadcast %243 : vector<1x32xf32> to vector<16x32xf32>
    %262 = arith.mulf %260, %261 : vector<16x32xf32>
    %263 = vector.broadcast %244 : vector<1x32xf32> to vector<16x32xf32>
    %264 = arith.addf %262, %263 : vector<16x32xf32>
    %265 = arith.truncf %264 : vector<16x32xf32> to vector<16x32xbf16>
    %cst_78 = arith.constant dense<0.000000e+00> : vector<16x64xf32>
    %266 = tpu.matmul %265, %174, %cst_78 {dimension_numbers = #tpu.dot_dimension_numbers<[1], [0], [0], [1], [0, 0, 1, 1], [], []>} : vector<16x32xbf16>, vector<32x64xbf16>, vector<16x64xf32> -> vector<16x64xf32>
    %c17 = arith.constant 17 : index
    %c0_79 = arith.constant 0 : index
    %267 = vector.load %arg4[%c17, %c0_79] : memref<21x96xf32, #tpu.memory_space<vmem>>, vector<1x64xf32>
    %268 = vector.broadcast %267 : vector<1x64xf32> to vector<16x64xf32>
    %269 = arith.addf %266, %268 : vector<16x64xf32>
    %cst_80 = arith.constant 5.000000e-01 : f32
    %270 = vector.broadcast %cst_80 : f32 to vector<16x64xf32>
    %271 = arith.mulf %270, %269 : vector<16x64xf32>
    %cst_81 = arith.constant 4.471500e-02 : f32
    %272 = vector.broadcast %cst_81 : f32 to vector<16x64xf32>
    %273 = arith.mulf %272, %269 : vector<16x64xf32>
    %274 = arith.mulf %273, %269 : vector<16x64xf32>
    %275 = arith.mulf %274, %269 : vector<16x64xf32>
    %276 = arith.addf %269, %275 : vector<16x64xf32>
    %cst_82 = arith.constant 0.797884583 : f32
    %277 = vector.broadcast %cst_82 : f32 to vector<16x64xf32>
    %278 = arith.mulf %277, %276 : vector<16x64xf32>
    %279 = math.tanh %278 : vector<16x64xf32>
    %cst_83 = arith.constant 1.000000e+00 : f32
    %280 = vector.broadcast %cst_83 : f32 to vector<16x64xf32>
    %281 = arith.addf %280, %279 : vector<16x64xf32>
    %282 = arith.mulf %271, %281 : vector<16x64xf32>
    %c1_84 = arith.constant 1 : index
    %c0_85 = arith.constant 0 : index
    %c0_86 = arith.constant 0 : index
    %283 = vector.load %arg3[%c1_84, %c0_85, %c0_86] : memref<3x64x32xbf16, #tpu.memory_space<vmem>>, vector<1x64x32xbf16>
    %284 = vector.shape_cast %283 : vector<1x64x32xbf16> to vector<64x32xbf16>
    %285 = arith.truncf %282 : vector<16x64xf32> to vector<16x64xbf16>
    %cst_87 = arith.constant dense<0.000000e+00> : vector<16x32xf32>
    %286 = tpu.matmul %285, %284, %cst_87 {dimension_numbers = #tpu.dot_dimension_numbers<[1], [0], [0], [1], [0, 0, 1, 1], [], []>} : vector<16x64xbf16>, vector<64x32xbf16>, vector<16x32xf32> -> vector<16x32xf32>
    %c18 = arith.constant 18 : index
    %c0_88 = arith.constant 0 : index
    %287 = vector.load %arg4[%c18, %c0_88] : memref<21x96xf32, #tpu.memory_space<vmem>>, vector<1x32xf32>
    %288 = vector.broadcast %287 : vector<1x32xf32> to vector<16x32xf32>
    %289 = arith.addf %286, %288 : vector<16x32xf32>
    %290 = arith.addf %289, %264 : vector<16x32xf32>
    %c19 = arith.constant 19 : index
    %c0_89 = arith.constant 0 : index
    %291 = vector.load %arg4[%c19, %c0_89] : memref<21x96xf32, #tpu.memory_space<vmem>>, vector<1x32xf32>
    %c20 = arith.constant 20 : index
    %c0_90 = arith.constant 0 : index
    %292 = vector.load %arg4[%c20, %c0_90] : memref<21x96xf32, #tpu.memory_space<vmem>>, vector<1x32xf32>
    %cst_91 = arith.constant dense<0.000000e+00> : vector<16xf32>
    %293 = vector.multi_reduction <add>, %290, %cst_91 [1] : vector<16x32xf32> to vector<16xf32>
    %294 = vector.shape_cast %293 : vector<16xf32> to vector<16x1xf32>
    %cst_92 = arith.constant 3.200000e+01 : f32
    %295 = vector.broadcast %cst_92 : f32 to vector<16x1xf32>
    %296 = arith.divf %294, %295 : vector<16x1xf32>
    %297 = vector.broadcast %296 : vector<16x1xf32> to vector<16x32xf32>
    %298 = arith.subf %290, %297 : vector<16x32xf32>
    %299 = arith.mulf %298, %298 : vector<16x32xf32>
    %cst_93 = arith.constant dense<0.000000e+00> : vector<16xf32>
    %300 = vector.multi_reduction <add>, %299, %cst_93 [1] : vector<16x32xf32> to vector<16xf32>
    %301 = vector.shape_cast %300 : vector<16xf32> to vector<16x1xf32>
    %cst_94 = arith.constant 3.200000e+01 : f32
    %302 = vector.broadcast %cst_94 : f32 to vector<16x1xf32>
    %303 = arith.divf %301, %302 : vector<16x1xf32>
    %cst_95 = arith.constant 9.99999996E-13 : f32
    %304 = vector.broadcast %cst_95 : f32 to vector<16x1xf32>
    %305 = arith.addf %303, %304 : vector<16x1xf32>
    %306 = math.rsqrt %305 : vector<16x1xf32>
    %307 = vector.broadcast %306 : vector<16x1xf32> to vector<16x32xf32>
    %308 = arith.mulf %298, %307 : vector<16x32xf32>
    %309 = vector.broadcast %291 : vector<1x32xf32> to vector<16x32xf32>
    %310 = arith.mulf %308, %309 : vector<16x32xf32>
    %311 = vector.broadcast %292 : vector<1x32xf32> to vector<16x32xf32>
    %312 = arith.addf %310, %311 : vector<16x32xf32>
    %313 = vector.shape_cast %312 : vector<16x32xf32> to vector<2x8x32xf32>
    %314 = vector.extract_strided_slice %313 {offsets = [0, 0, 0], sizes = [2, 1, 32], strides = [1, 1, 1]} : vector<2x8x32xf32> to vector<2x1x32xf32>
    %315 = vector.shape_cast %314 : vector<2x1x32xf32> to vector<2x32xf32>
    %c2 = arith.constant 2 : index
    %c0_96 = arith.constant 0 : index
    %c0_97 = arith.constant 0 : index
    %316 = vector.load %arg3[%c2, %c0_96, %c0_97] : memref<3x64x32xbf16, #tpu.memory_space<vmem>>, vector<1x64x32xbf16>
    %317 = vector.shape_cast %316 : vector<1x64x32xbf16> to vector<64x32xbf16>
    %318 = vector.extract_strided_slice %317 {offsets = [0, 0], sizes = [32, 32], strides = [1, 1]} : vector<64x32xbf16> to vector<32x32xbf16>
    %319 = arith.truncf %315 : vector<2x32xf32> to vector<2x32xbf16>
    %cst_98 = arith.constant dense<0.000000e+00> : vector<2x32xf32>
    %320 = tpu.matmul %319, %318, %cst_98 {dimension_numbers = #tpu.dot_dimension_numbers<[1], [0], [0], [1], [0, 0, 1, 1], [], []>} : vector<2x32xbf16>, vector<32x32xbf16>, vector<2x32xf32> -> vector<2x32xf32>
    %c2_99 = arith.constant 2 : index
    %c0_100 = arith.constant 0 : index
    %321 = vector.load %arg4[%c2_99, %c0_100] : memref<21x96xf32, #tpu.memory_space<vmem>>, vector<1x32xf32>
    %322 = vector.broadcast %321 : vector<1x32xf32> to vector<2x32xf32>
    %323 = arith.addf %320, %322 : vector<2x32xf32>
    %324 = math.tanh %323 : vector<2x32xf32>
    %c3 = arith.constant 3 : index
    %c0_101 = arith.constant 0 : index
    %325 = vector.load %arg4[%c3, %c0_101] : memref<21x96xf32, #tpu.memory_space<vmem>>, vector<1x32xf32>
    %326 = vector.broadcast %325 : vector<1x32xf32> to vector<2x32xf32>
    %327 = arith.mulf %324, %326 : vector<2x32xf32>
    %cst_102 = arith.constant dense<0.000000e+00> : vector<2xf32>
    %328 = vector.multi_reduction <add>, %327, %cst_102 [1] : vector<2x32xf32> to vector<2xf32>
    %329 = vector.shape_cast %328 : vector<2xf32> to vector<2x1xf32>
    %c4 = arith.constant 4 : index
    %c0_103 = arith.constant 0 : index
    %330 = vector.load %arg4[%c4, %c0_103] : memref<21x96xf32, #tpu.memory_space<vmem>>, vector<1x1xf32>
    %331 = vector.broadcast %330 : vector<1x1xf32> to vector<2x1xf32>
    %332 = arith.addf %329, %331 : vector<2x1xf32>
    %c0_104 = arith.constant 0 : index
    %c0_105 = arith.constant 0 : index
    %333 = vector.load %arg5[%c0_104, %c0_105] : memref<2x1xf32, #tpu.memory_space<vmem>>, vector<2x1xf32>
    tpu.vector_store %arg5[%c0_104, %c0_105], %332 {strides = array<i32>} : memref<2x1xf32, #tpu.memory_space<vmem>>, vector<2x1xf32>,
    return
  }
}

</mosaic_0001>

<llo_original>
// kernel: text_complexity_regressor.1
$region0: #{text_complexity_regressor.1}
  #allocation0 [shape = 'u32[]', space=smem, size = 0x4, offset = 0x4, fixed_abs, tag = 'smem constant byte address 0x4 - core index']
  #allocation1 [shape = 'u32[144,128]{1,0:T(1,128)}', space=vmem, size = 0x12000, scoped, tag = 'internal scratch']
  %s0 = inlined_call_operand.vmem [shape: f32[16,32], index: 0, kind: input, shape index: {}]
  %s1 = inlined_call_operand.vmem [shape: f32[2,8], index: 1, kind: input, shape index: {}]
  %s2 = inlined_call_operand.vmem [shape: bf16[2,32,192], index: 2, kind: input, shape index: {}]
  %s3 = inlined_call_operand.vmem [shape: bf16[3,64,32], index: 3, kind: input, shape index: {}]
  %s4 = inlined_call_operand.vmem [shape: f32[21,96], index: 4, kind: input, shape index: {}]
  %s5 = inlined_call_operand.vmem [shape: f32[2,1], index: 5, kind: output, shape index: {}]
  %s6 = sld [smem:[#allocation0]]
  $region30: #{text_complexity_regressor.1} parent=0
    _
  %s8 = ssub.s32 1, %s6
  %s9 = scalar_select 0, %s8, %s6
  // Predicated region
  $region2: #{text_complexity_regressor.1} parent=0 // pred_check
    _
  $region3: #{text_complexity_regressor.1} parent=0 // pred_check_branch
    %11 = sbr.rel (0) target = $region5
  $region4: #{text_complexity_regressor.1} parent=0 // pred_region
    _
  $region5: #{text_complexity_regressor.1} parent=0 // pred_fallthru
    _
  // Predicated region
  $region6: #{text_complexity_regressor.1} parent=0 // pred_check
    _
  $region7: #{text_complexity_regressor.1} parent=0 // pred_check_branch
    %13 = sbr.rel (0) target = $region9
  $region8: #{text_complexity_regressor.1} parent=0 // pred_region
    _
  $region9: #{text_complexity_regressor.1} parent=0 // pred_fallthru
    _
  // Predicated region
  $region10: #{text_complexity_regressor.1} parent=0 // pred_check
    _
  $region11: #{text_complexity_regressor.1} parent=0 // pred_check_branch
    %15 = sbr.rel (0) target = $region13
  $region12: #{text_complexity_regressor.1} parent=0 // pred_region
    _
  $region13: #{text_complexity_regressor.1} parent=0 // pred_fallthru
    _
  // Predicated region
  $region14: #{text_complexity_regressor.1} parent=0 // pred_check
    _
  $region15: #{text_complexity_regressor.1} parent=0 // pred_check_branch
    %17 = sbr.rel (0) target = $region17
  $region16: #{text_complexity_regressor.1} parent=0 // pred_region
    _
  $region17: #{text_complexity_regressor.1} parent=0 // pred_fallthru
    _
  // Predicated region
  $region18: #{text_complexity_regressor.1} parent=0 // pred_check
    _
  $region19: #{text_complexity_regressor.1} parent=0 // pred_check_branch
    %19 = sbr.rel (0) target = $region21
  $region20: #{text_complexity_regressor.1} parent=0 // pred_region
    _
  $region21: #{text_complexity_regressor.1} parent=0 // pred_fallthru
    _
  %v21 = vld [vmem:[%s0] sm:$0xff]
  %v22 = vld [vmem:[%s0 + $0x8] sm:$0xff]
  %v23 = vld [vmem:[%s4] sm:$0x1]
  %v24 = vld [vmem:[%s4 + $0x1] sm:$0x1]
  %vm25 = vcmask 261120
  %v26 = vsel %vm25, %v21, 0.0
  %27 = vadd.xlane.f32.xlu0 %v26
  %v28 = vpop.xlane.xlu0 %27
  %v29 = vsel %vm25, %v22, 0.0
  %30 = vadd.xlane.f32.xlu0 %v29
  %v31 = vpop.xlane.xlu0 %30
  %v32 = vrcp.pop 32.0
  %v33 = vmul.f32 %v28, %v32
  %v34 = vmul.f32 %v31, %v32
  %v35 = vsub.f32 %v21, %v33
  %v36 = vsub.f32 %v22, %v34
  %v37 = vmul.f32 %v35, %v35
  %v38 = vmul.f32 %v36, %v36
  %v39 = vsel %vm25, %v37, 0.0
  %40 = vadd.xlane.f32.xlu0 %v39
  %v41 = vpop.xlane.xlu0 %40
  %v42 = vsel %vm25, %v38, 0.0
  %43 = vadd.xlane.f32.xlu0 %v42
  %v44 = vpop.xlane.xlu0 %43
  %v45 = vmul.f32 %v41, %v32
  %v46 = vmul.f32 %v44, %v32
  %v47 = vadd.f32 %v45, 1e-12
  %v48 = vadd.f32 %v46, 1e-12
  %v49 = vrsqrt.pop %v47
  %v50 = vrsqrt.pop %v48
  %v51 = vmul.f32 %v35, %v49
  %v52 = vmul.f32 %v36, %v50
  %v53 = vlaneseq
  %v54 = vshrl.u32 %v53, 7
  %v55 = vsub.s32 0, %v54
  %v56 = vrot.slane %v23, %v55
  %v57 = vmul.f32 %v51, %v56
  %v58 = vmul.f32 %v52, %v56
  %v59 = vlaneseq
  %v60 = vshrl.u32 %v59, 7
  %v61 = vsub.s32 0, %v60
  %v62 = vrot.slane %v24, %v61
  %v63 = vadd.f32 %v57, %v62
  %v64 = vadd.f32 %v58, %v62
  %v65 = vld [vmem:[%s1] sm:$0x3]
  %v68 = vunpack.c.l.s4 1966171168
  %v69 = vunpack.c.0.s8 %v68
  %v70 = vlaneseq
  %v71 = vshrl.u32 %v70, 7
  %v72 = vsub.s32 %v69, %v71
  %v73 = vrot.slane %v65, %v72
  %v74 = vcombine.high %v73, %v73
  %v76 = vunpack.c.l.s4 1966171168
  %v77 = vunpack.c.0.s8 %v76
  %v78 = vlaneseq
  %v79 = vshrl.u32 %v78, 7
  %v80 = vsub.s32 %v77, %v79
  %v81 = vrot.slane %v73, %v80
  %v83 = vunpack.c.l.s4 1966171168
  %v84 = vunpack.c.0.s8 %v83
  %v85 = vlaneseq
  %v86 = vshrl.u32 %v85, 7
  %v87 = vsub.s32 %v84, %v86
  %v88 = vrot.slane %v74, %v87
  %v89 = vlaneseq
  %v90 = vshrl.u32 %v89, 7
  %v91 = vsub.s32 0, %v90
  %v92 = vrot.slane %v81, %v91
  %v93 = vlaneseq
  %v94 = vshrl.u32 %v93, 7
  %v95 = vsub.s32 0, %v94
  %v96 = vrot.slane %v88, %v95
  %v99 = vld [vmem:[%s2] sm:$0xff]
  %v100 = vld [vmem:[%s2 + $0x8] sm:$0xff]
  %v101 = vld [vmem:[%s2 + $0x10] sm:$0xff]
  %v102 = vld [vmem:[%s2 + $0x18] sm:$0xff]
  %v103 = vpack.c.bf16 %v64, %v63
  %v104 = vld [vmem:[%s4 + $0x5] sm:$0x1]
  %v105 = vlaneseq
  %v106 = vshrl.u32 %v105, 7
  %v107 = vsub.s32 0, %v106
  %v108 = vrot.slane %v104, %v107
  %v113 = vunpack.c.l.b16 %v99
  %v114 = vunpack.c.l.b16 %v100
  %v115 = vunpack.c.l.b16 %v101
  %v116 = vunpack.c.l.b16 %v102
  %v117 = vpack.c.b16 %v114, %v113
  %v118 = vpack.c.b16 %v116, %v115
  %v122 = vsel %vm25, %v103, 0
  %124 = vmatprep.subr.bf16.mxu0 0
  %125 = vmatpush1.bf16.msra.mxu0 0
  %126 = vmatprep.subr.bf16.mxu0 0
  %127 = vmatpush1.bf16.msra.mxu0 0
  %128 = vmatprep.subr.bf16.mxu0 0
  %129 = vmatpush1.bf16.msra.mxu0 0
  %130 = vmatprep.subr.bf16.mxu0 0
  %131 = vmatpush1.bf16.msra.mxu0 0
  %132 = vmatprep.subr.bf16.mxu0 0
  %133 = vmatpush1.bf16.msra.mxu0 0
  %134 = vmatprep.subr.bf16.mxu0 0
  %135 = vmatpush1.bf16.msra.mxu0 0
  %136 = vmatprep.subr.bf16.mxu0 0
  %137 = vmatpush1.bf16.msra.mxu0 %v118
  %138 = vmatprep.subr.bf16.mxu0 0
  %139 = vmatpush1.bf16.msra.mxu0 %v117
  %140 = vmatprep.subr.bf16.mxu0 0
  %141 = vmatpush2.bf16.msra.mxu0 0
  %142 = vmatprep.subr.bf16.mxu0 0
  %143 = vmatpush2.bf16.msra.mxu0 0
  %144 = vmatprep.subr.bf16.mxu0 0
  %145 = vmatpush2.bf16.msra.mxu0 0
  %146 = vmatprep.subr.bf16.mxu0 0
  %147 = vmatpush2.bf16.msra.mxu0 0
  %148 = vmatprep.subr.bf16.mxu0 0
  %149 = vmatpush2.bf16.msra.mxu0 0
  %150 = vmatprep.subr.bf16.mxu0 0
  %151 = vmatpush2.bf16.msra.mxu0 0
  %152 = vmatprep.subr.bf16.mxu0 0
  %153 = vmatpush2.bf16.msra.mxu0 0
  %154 = vmatprep.subr.bf16.mxu0 0
  %155 = vmatpush2.bf16.msra.mxu0 0
  %156 = vmatprep.mubr.bf16.mxu0 0
  %157 = vmatmul.mubr.bf16.gmra.mxu0 %v122
  %v158 = vpop.f32.mrf.mxu0
  %v159 = vadd.f32 %v108, %v158
  %v160 = vpop.f32.mrf.mxu0
  %v161 = vpop.f32.mrf.mxu0
  %v162 = vadd.f32 %v108, %v161
  %v163 = vpop.f32.mrf.mxu0
  %164 = vdwg.mxu0
  %v165 = vpack.c.bf16 %v159, %v159
  %v166 = vpack.c.bf16 %v162, %v162
  %168 = vrot.lane.b32.xlu0 %v165, 96
  %v169 = vpop.permute.xlu0 %168
  %vm170 = vcmask 130048
  %v172 = vsel %vm170, %v165, 0
  %v175 = vsel %vm170, %v169, 0
  %177 = vmatprep.subr.bf16.mxu0 0
  %178 = vmatpush1.bf16.xpose.msra.mxu0 0
  %179 = vmatprep.subr.bf16.mxu0 0
  %180 = vmatpush1.bf16.xpose.msra.mxu0 0
  %181 = vmatprep.subr.bf16.mxu0 0
  %182 = vmatpush1.bf16.xpose.msra.mxu0 0
  %183 = vmatprep.subr.bf16.mxu0 0
  %184 = vmatpush1.bf16.xpose.msra.mxu0 0
  %185 = vmatprep.subr.bf16.mxu0 0
  %186 = vmatpush1.bf16.xpose.msra.mxu0 0
  %187 = vmatprep.subr.bf16.mxu0 0
  %188 = vmatpush1.bf16.xpose.msra.mxu0 0
  %189 = vmatprep.subr.bf16.mxu0 0
  %190 = vmatpush1.bf16.xpose.msra.mxu0 0
  %191 = vmatprep.subr.bf16.mxu0 0
  %192 = vmatpush1.bf16.xpose.msra.mxu0 %v175
  %193 = vmatprep.subr.bf16.mxu0 0
  %194 = vmatpush2.bf16.xpose.msra.mxu0 0
  %195 = vmatprep.subr.bf16.mxu0 0
  %196 = vmatpush2.bf16.xpose.msra.mxu0 0
  %197 = vmatprep.subr.bf16.mxu0 0
  %198 = vmatpush2.bf16.xpose.msra.mxu0 0
  %199 = vmatprep.subr.bf16.mxu0 0
  %200 = vmatpush2.bf16.xpose.msra.mxu0 0
  %201 = vmatprep.subr.bf16.mxu0 0
  %202 = vmatpush2.bf16.xpose.msra.mxu0 0
  %203 = vmatprep.subr.bf16.mxu0 0
  %204 = vmatpush2.bf16.xpose.msra.mxu0 0
  %205 = vmatprep.subr.bf16.mxu0 0
  %206 = vmatpush2.bf16.xpose.msra.mxu0 0
  %207 = vmatprep.subr.bf16.mxu0 0
  %208 = vmatpush2.bf16.xpose.msra.mxu0 0
  %209 = vmatprep.mubr.bf16.mxu0 0
  %210 = vmatmul.mubr.bf16.gmra.mxu0 %v172
  %v211 = vpop.f32.mrf.mxu0
  %v212 = vadd.f32 0.0, %v211
  %v213 = vpop.f32.mrf.mxu0
  %v214 = vpop.f32.mrf.mxu0
  %v215 = vpop.f32.mrf.mxu0
  %216 = vdwg.mxu0
  %218 = vrot.lane.b32.xlu0 %v166, 96
  %v219 = vpop.permute.xlu0 %218
  %v221 = vsel %vm170, %v166, 0
  %v224 = vsel %vm170, %v219, 0
  %226 = vmatprep.subr.bf16.mxu0 0
  %227 = vmatpush1.bf16.xpose.msra.mxu0 0
  %228 = vmatprep.subr.bf16.mxu0 0
  %229 = vmatpush1.bf16.xpose.msra.mxu0 0
  %230 = vmatprep.subr.bf16.mxu0 0
  %231 = vmatpush1.bf16.xpose.msra.mxu0 0
  %232 = vmatprep.subr.bf16.mxu0 0
  %233 = vmatpush1.bf16.xpose.msra.mxu0 0
  %234 = vmatprep.subr.bf16.mxu0 0
  %235 = vmatpush1.bf16.xpose.msra.mxu0 0
  %236 = vmatprep.subr.bf16.mxu0 0
  %237 = vmatpush1.bf16.xpose.msra.mxu0 0
  %238 = vmatprep.subr.bf16.mxu0 0
  %239 = vmatpush1.bf16.xpose.msra.mxu0 0
  %240 = vmatprep.subr.bf16.mxu0 0
  %241 = vmatpush1.bf16.xpose.msra.mxu0 %v224
  %242 = vmatprep.subr.bf16.mxu0 0
  %243 = vmatpush2.bf16.xpose.msra.mxu0 0
  %244 = vmatprep.subr.bf16.mxu0 0
  %245 = vmatpush2.bf16.xpose.msra.mxu0 0
  %246 = vmatprep.subr.bf16.mxu0 0
  %247 = vmatpush2.bf16.xpose.msra.mxu0 0
  %248 = vmatprep.subr.bf16.mxu0 0
  %249 = vmatpush2.bf16.xpose.msra.mxu0 0
  %250 = vmatprep.subr.bf16.mxu0 0
  %251 = vmatpush2.bf16.xpose.msra.mxu0 0
  %252 = vmatprep.subr.bf16.mxu0 0
  %253 = vmatpush2.bf16.xpose.msra.mxu0 0
  %254 = vmatprep.subr.bf16.mxu0 0
  %255 = vmatpush2.bf16.xpose.msra.mxu0 0
  %256 = vmatprep.subr.bf16.mxu0 0
  %257 = vmatpush2.bf16.xpose.msra.mxu0 0
  %258 = vmatprep.mubr.bf16.mxu0 0
  %259 = vmatmul.mubr.bf16.gmra.mxu0 %v221
  %v260 = vpop.f32.mrf.mxu0
  %v261 = vadd.f32 0.0, %v260
  %v262 = vpop.f32.mrf.mxu0
  %v263 = vpop.f32.mrf.mxu0
  %v264 = vpop.f32.mrf.mxu0
  %265 = vdwg.mxu0
  %v266 = vmul.f32 %v212, 0.25
  %v267 = vmul.f32 %v261, 0.25
  %v268 = vadd.f32 %v266, %v92
  %v269 = vadd.f32 %v267, %v96
  %vm270 = vcmask 64512
  %v271 = vsel %vm270, %v268, -inf
  %272 = vmax.xlane.f32.xlu0 %v271
  %v273 = vpop.xlane.xlu0 %272
  %v274 = vsel %vm270, %v269, -inf
  %275 = vmax.xlane.f32.xlu0 %v274
  %v276 = vpop.xlane.xlu0 %275
  %v277 = vsub.f32 %v268, %v273
  %v278 = vsub.f32 %v269, %v276
  %v279 = vmul.f32 %v277, 1.442695
  %v280 = vpow.pop %v279
  %v281 = vmul.f32 %v278, 1.442695
  %v282 = vpow.pop %v281
  %v283 = vsel %vm270, %v280, 0.0
  %284 = vadd.xlane.f32.xlu0 %v283
  %v285 = vpop.xlane.xlu0 %284
  %v286 = vsel %vm270, %v282, 0.0
  %287 = vadd.xlane.f32.xlu0 %v286
  %v288 = vpop.xlane.xlu0 %287
  %v289 = vrcp.pop %v285
  %v290 = vrcp.pop %v288
  %v291 = vmul.f32 %v280, %v289
  %v292 = vmul.f32 %v282, %v290
  %v293 = vpack.c.bf16 %v291, %v291
  %v294 = vpack.c.bf16 %v292, %v292
  %295 = vrot.lane.b32.xlu0 %v165, 64
  %v296 = vpop.permute.xlu0 %295
  %v298 = vsel %vm270, %v293, 0
  %vm300 = vcmask 1043456
  %v302 = vsel %vm300, %v296, 0
  %304 = vmatprep.subr.bf16.mxu0 0
  %305 = vmatpush1.bf16.msra.mxu0 0
  %306 = vmatprep.subr.bf16.mxu0 0
  %307 = vmatpush1.bf16.msra.mxu0 0
  %308 = vmatprep.subr.bf16.mxu0 0
  %309 = vmatpush1.bf16.msra.mxu0 0
  %310 = vmatprep.subr.bf16.mxu0 0
  %311 = vmatpush1.bf16.msra.mxu0 0
  %312 = vmatprep.subr.bf16.mxu0 0
  %313 = vmatpush1.bf16.msra.mxu0 0
  %314 = vmatprep.subr.bf16.mxu0 0
  %315 = vmatpush1.bf16.msra.mxu0 0
  %316 = vmatprep.subr.bf16.mxu0 0
  %317 = vmatpush1.bf16.msra.mxu0 0
  %318 = vmatprep.subr.bf16.mxu0 0
  %319 = vmatpush1.bf16.msra.mxu0 %v302
  %320 = vmatprep.subr.bf16.mxu0 0
  %321 = vmatpush2.bf16.msra.mxu0 0
  %322 = vmatprep.subr.bf16.mxu0 0
  %323 = vmatpush2.bf16.msra.mxu0 0
  %324 = vmatprep.subr.bf16.mxu0 0
  %325 = vmatpush2.bf16.msra.mxu0 0
  %326 = vmatprep.subr.bf16.mxu0 0
  %327 = vmatpush2.bf16.msra.mxu0 0
  %328 = vmatprep.subr.bf16.mxu0 0
  %329 = vmatpush2.bf16.msra.mxu0 0
  %330 = vmatprep.subr.bf16.mxu0 0
  %331 = vmatpush2.bf16.msra.mxu0 0
  %332 = vmatprep.subr.bf16.mxu0 0
  %333 = vmatpush2.bf16.msra.mxu0 0
  %334 = vmatprep.subr.bf16.mxu0 0
  %335 = vmatpush2.bf16.msra.mxu0 0
  %336 = vmatprep.mubr.bf16.mxu0 0
  %337 = vmatmul.mubr.bf16.gmra.mxu0 %v298
  %v338 = vpop.f32.mrf.mxu0
  %v339 = vadd.f32 0.0, %v338
  %v340 = vpop.f32.mrf.mxu0
  %v341 = vpop.f32.mrf.mxu0
  %v342 = vpop.f32.mrf.mxu0
  %343 = vdwg.mxu0
  %344 = vrot.lane.b32.xlu0 %v166, 64
  %v345 = vpop.permute.xlu0 %344
  %v347 = vsel %vm270, %v294, 0
  %v350 = vsel %vm300, %v345, 0
  %352 = vmatprep.subr.bf16.mxu0 0
  %353 = vmatpush1.bf16.msra.mxu0 0
  %354 = vmatprep.subr.bf16.mxu0 0
  %355 = vmatpush1.bf16.msra.mxu0 0
  %356 = vmatprep.subr.bf16.mxu0 0
  %357 = vmatpush1.bf16.msra.mxu0 0
  %358 = vmatprep.subr.bf16.mxu0 0
  %359 = vmatpush1.bf16.msra.mxu0 0
  %360 = vmatprep.subr.bf16.mxu0 0
  %361 = vmatpush1.bf16.msra.mxu0 0
  %362 = vmatprep.subr.bf16.mxu0 0
  %363 = vmatpush1.bf16.msra.mxu0 0
  %364 = vmatprep.subr.bf16.mxu0 0
  %365 = vmatpush1.bf16.msra.mxu0 0
  %366 = vmatprep.subr.bf16.mxu0 0
  %367 = vmatpush1.bf16.msra.mxu0 %v350
  %368 = vmatprep.subr.bf16.mxu0 0
  %369 = vmatpush2.bf16.msra.mxu0 0
  %370 = vmatprep.subr.bf16.mxu0 0
  %371 = vmatpush2.bf16.msra.mxu0 0
  %372 = vmatprep.subr.bf16.mxu0 0
  %373 = vmatpush2.bf16.msra.mxu0 0
  %374 = vmatprep.subr.bf16.mxu0 0
  %375 = vmatpush2.bf16.msra.mxu0 0
  %376 = vmatprep.subr.bf16.mxu0 0
  %377 = vmatpush2.bf16.msra.mxu0 0
  %378 = vmatprep.subr.bf16.mxu0 0
  %379 = vmatpush2.bf16.msra.mxu0 0
  %380 = vmatprep.subr.bf16.mxu0 0
  %381 = vmatpush2.bf16.msra.mxu0 0
  %382 = vmatprep.subr.bf16.mxu0 0
  %383 = vmatpush2.bf16.msra.mxu0 0
  %384 = vmatprep.mubr.bf16.mxu0 0
  %385 = vmatmul.mubr.bf16.gmra.mxu0 %v347
  %v386 = vpop.f32.mrf.mxu0
  %v387 = vadd.f32 0.0, %v386
  %v388 = vpop.f32.mrf.mxu0
  %v389 = vpop.f32.mrf.mxu0
  %v390 = vpop.f32.mrf.mxu0
  %391 = vdwg.mxu0
  %v392 = vpack.c.bf16 %v387, %v339
  %393 = vrot.lane.b32.xlu0 %v165, 112
  %v394 = vpop.permute.xlu0 %393
  %395 = vrot.lane.b32.xlu0 %v165, 80
  %v396 = vpop.permute.xlu0 %395
  %v398 = vsel %vm170, %v394, 0
  %v401 = vsel %vm170, %v396, 0
  %403 = vmatprep.subr.bf16.mxu0 0
  %404 = vmatpush1.bf16.xpose.msra.mxu0 0
  %405 = vmatprep.subr.bf16.mxu0 0
  %406 = vmatpush1.bf16.xpose.msra.mxu0 0
  %407 = vmatprep.subr.bf16.mxu0 0
  %408 = vmatpush1.bf16.xpose.msra.mxu0 0
  %409 = vmatprep.subr.bf16.mxu0 0
  %410 = vmatpush1.bf16.xpose.msra.mxu0 0
  %411 = vmatprep.subr.bf16.mxu0 0
  %412 = vmatpush1.bf16.xpose.msra.mxu0 0
  %413 = vmatprep.subr.bf16.mxu0 0
  %414 = vmatpush1.bf16.xpose.msra.mxu0 0
  %415 = vmatprep.subr.bf16.mxu0 0
  %416 = vmatpush1.bf16.xpose.msra.mxu0 0
  %417 = vmatprep.subr.bf16.mxu0 0
  %418 = vmatpush1.bf16.xpose.msra.mxu0 %v401
  %419 = vmatprep.subr.bf16.mxu0 0
  %420 = vmatpush2.bf16.xpose.msra.mxu0 0
  %421 = vmatprep.subr.bf16.mxu0 0
  %422 = vmatpush2.bf16.xpose.msra.mxu0 0
  %423 = vmatprep.subr.bf16.mxu0 0
  %424 = vmatpush2.bf16.xpose.msra.mxu0 0
  %425 = vmatprep.subr.bf16.mxu0 0
  %426 = vmatpush2.bf16.xpose.msra.mxu0 0
  %427 = vmatprep.subr.bf16.mxu0 0
  %428 = vmatpush2.bf16.xpose.msra.mxu0 0
  %429 = vmatprep.subr.bf16.mxu0 0
  %430 = vmatpush2.bf16.xpose.msra.mxu0 0
  %431 = vmatprep.subr.bf16.mxu0 0
  %432 = vmatpush2.bf16.xpose.msra.mxu0 0
  %433 = vmatprep.subr.bf16.mxu0 0
  %434 = vmatpush2.bf16.xpose.msra.mxu0 0
  %435 = vmatprep.mubr.bf16.mxu0 0
  %436 = vmatmul.mubr.bf16.gmra.mxu0 %v398
  %v437 = vpop.f32.mrf.mxu0
  %v438 = vadd.f32 0.0, %v437
  %v439 = vpop.f32.mrf.mxu0
  %v440 = vpop.f32.mrf.mxu0
  %v441 = vpop.f32.mrf.mxu0
  %442 = vdwg.mxu0
  %443 = vrot.lane.b32.xlu0 %v166, 112
  %v444 = vpop.permute.xlu0 %443
  %445 = vrot.lane.b32.xlu0 %v166, 80
  %v446 = vpop.permute.xlu0 %445
  %v448 = vsel %vm170, %v444, 0
  %v451 = vsel %vm170, %v446, 0
  %453 = vmatprep.subr.bf16.mxu0 0
  %454 = vmatpush1.bf16.xpose.msra.mxu0 0
  %455 = vmatprep.subr.bf16.mxu0 0
  %456 = vmatpush1.bf16.xpose.msra.mxu0 0
  %457 = vmatprep.subr.bf16.mxu0 0
  %458 = vmatpush1.bf16.xpose.msra.mxu0 0
  %459 = vmatprep.subr.bf16.mxu0 0
  %460 = vmatpush1.bf16.xpose.msra.mxu0 0
  %461 = vmatprep.subr.bf16.mxu0 0
  %462 = vmatpush1.bf16.xpose.msra.mxu0 0
  %463 = vmatprep.subr.bf16.mxu0 0
  %464 = vmatpush1.bf16.xpose.msra.mxu0 0
  %465 = vmatprep.subr.bf16.mxu0 0
  %466 = vmatpush1.bf16.xpose.msra.mxu0 0
  %467 = vmatprep.subr.bf16.mxu0 0
  %468 = vmatpush1.bf16.xpose.msra.mxu0 %v451
  %469 = vmatprep.subr.bf16.mxu0 0
  %470 = vmatpush2.bf16.xpose.msra.mxu0 0
  %471 = vmatprep.subr.bf16.mxu0 0
  %472 = vmatpush2.bf16.xpose.msra.mxu0 0
  %473 = vmatprep.subr.bf16.mxu0 0
  %474 = vmatpush2.bf16.xpose.msra.mxu0 0
  %475 = vmatprep.subr.bf16.mxu0 0
  %476 = vmatpush2.bf16.xpose.msra.mxu0 0
  %477 = vmatprep.subr.bf16.mxu0 0
  %478 = vmatpush2.bf16.xpose.msra.mxu0 0
  %479 = vmatprep.subr.bf16.mxu0 0
  %480 = vmatpush2.bf16.xpose.msra.mxu0 0
  %481 = vmatprep.subr.bf16.mxu0 0
  %482 = vmatpush2.bf16.xpose.msra.mxu0 0
  %483 = vmatprep.subr.bf16.mxu0 0
  %484 = vmatpush2.bf16.xpose.msra.mxu0 0
  %485 = vmatprep.mubr.bf16.mxu0 0
  %486 = vmatmul.mubr.bf16.gmra.mxu0 %v448
  %v487 = vpop.f32.mrf.mxu0
  %v488 = vadd.f32 0.0, %v487
  %v489 = vpop.f32.mrf.mxu0
  %v490 = vpop.f32.mrf.mxu0
  %v491 = vpop.f32.mrf.mxu0
  %492 = vdwg.mxu0
  %v493 = vmul.f32 %v438, 0.25
  %v494 = vmul.f32 %v488, 0.25
  %v495 = vadd.f32 %v493, %v92
  %v496 = vadd.f32 %v494, %v96
  %v497 = vsel %vm270, %v495, -inf
  %498 = vmax.xlane.f32.xlu0 %v497
  %v499 = vpop.xlane.xlu0 %498
  %v500 = vsel %vm270, %v496, -inf
  %501 = vmax.xlane.f32.xlu0 %v500
  %v502 = vpop.xlane.xlu0 %501
  %v503 = vsub.f32 %v495, %v499
  %v504 = vsub.f32 %v496, %v502
  %v505 = vmul.f32 %v503, 1.442695
  %v506 = vpow.pop %v505
  %v507 = vmul.f32 %v504, 1.442695
  %v508 = vpow.pop %v507
  %v509 = vsel %vm270, %v506, 0.0
  %510 = vadd.xlane.f32.xlu0 %v509
  %v511 = vpop.xlane.xlu0 %510
  %v512 = vsel %vm270, %v508, 0.0
  %513 = vadd.xlane.f32.xlu0 %v512
  %v514 = vpop.xlane.xlu0 %513
  %v515 = vrcp.pop %v511
  %v516 = vrcp.pop %v514
  %v517 = vmul.f32 %v506, %v515
  %v518 = vmul.f32 %v508, %v516
  %v519 = vpack.c.bf16 %v517, %v517
  %v520 = vpack.c.bf16 %v518, %v518
  %521 = vrot.lane.b32.xlu0 %v165, 48
  %v522 = vpop.permute.xlu0 %521
  %v524 = vsel %vm270, %v519, 0
  %v527 = vsel %vm300, %v522, 0
  %529 = vmatprep.subr.bf16.mxu0 0
  %530 = vmatpush1.bf16.msra.mxu0 0
  %531 = vmatprep.subr.bf16.mxu0 0
  %532 = vmatpush1.bf16.msra.mxu0 0
  %533 = vmatprep.subr.bf16.mxu0 0
  %534 = vmatpush1.bf16.msra.mxu0 0
  %535 = vmatprep.subr.bf16.mxu0 0
  %536 = vmatpush1.bf16.msra.mxu0 0
  %537 = vmatprep.subr.bf16.mxu0 0
  %538 = vmatpush1.bf16.msra.mxu0 0
  %539 = vmatprep.subr.bf16.mxu0 0
  %540 = vmatpush1.bf16.msra.mxu0 0
  %541 = vmatprep.subr.bf16.mxu0 0
  %542 = vmatpush1.bf16.msra.mxu0 0
  %543 = vmatprep.subr.bf16.mxu0 0
  %544 = vmatpush1.bf16.msra.mxu0 %v527
  %545 = vmatprep.subr.bf16.mxu0 0
  %546 = vmatpush2.bf16.msra.mxu0 0
  %547 = vmatprep.subr.bf16.mxu0 0
  %548 = vmatpush2.bf16.msra.mxu0 0
  %549 = vmatprep.subr.bf16.mxu0 0
  %550 = vmatpush2.bf16.msra.mxu0 0
  %551 = vmatprep.subr.bf16.mxu0 0
  %552 = vmatpush2.bf16.msra.mxu0 0
  %553 = vmatprep.subr.bf16.mxu0 0
  %554 = vmatpush2.bf16.msra.mxu0 0
  %555 = vmatprep.subr.bf16.mxu0 0
  %556 = vmatpush2.bf16.msra.mxu0 0
  %557 = vmatprep.subr.bf16.mxu0 0
  %558 = vmatpush2.bf16.msra.mxu0 0
  %559 = vmatprep.subr.bf16.mxu0 0
  %560 = vmatpush2.bf16.msra.mxu0 0
  %561 = vmatprep.mubr.bf16.mxu0 0
  %562 = vmatmul.mubr.bf16.gmra.mxu0 %v524
  %v563 = vpop.f32.mrf.mxu0
  %v564 = vadd.f32 0.0, %v563
  %v565 = vpop.f32.mrf.mxu0
  %v566 = vpop.f32.mrf.mxu0
  %v567 = vpop.f32.mrf.mxu0
  %568 = vdwg.mxu0
  %569 = vrot.lane.b32.xlu0 %v166, 48
  %v570 = vpop.permute.xlu0 %569
  %v572 = vsel %vm270, %v520, 0
  %v575 = vsel %vm300, %v570, 0
  %577 = vmatprep.subr.bf16.mxu0 0
  %578 = vmatpush1.bf16.msra.mxu0 0
  %579 = vmatprep.subr.bf16.mxu0 0
  %580 = vmatpush1.bf16.msra.mxu0 0
  %581 = vmatprep.subr.bf16.mxu0 0
  %582 = vmatpush1.bf16.msra.mxu0 0
  %583 = vmatprep.subr.bf16.mxu0 0
  %584 = vmatpush1.bf16.msra.mxu0 0
  %585 = vmatprep.subr.bf16.mxu0 0
  %586 = vmatpush1.bf16.msra.mxu0 0
  %587 = vmatprep.subr.bf16.mxu0 0
  %588 = vmatpush1.bf16.msra.mxu0 0
  %589 = vmatprep.subr.bf16.mxu0 0
  %590 = vmatpush1.bf16.msra.mxu0 0
  %591 = vmatprep.subr.bf16.mxu0 0
  %592 = vmatpush1.bf16.msra.mxu0 %v575
  %593 = vmatprep.subr.bf16.mxu0 0
  %594 = vmatpush2.bf16.msra.mxu0 0
  %595 = vmatprep.subr.bf16.mxu0 0
  %596 = vmatpush2.bf16.msra.mxu0 0
  %597 = vmatprep.subr.bf16.mxu0 0
  %598 = vmatpush2.bf16.msra.mxu0 0
  %599 = vmatprep.subr.bf16.mxu0 0
  %600 = vmatpush2.bf16.msra.mxu0 0
  %601 = vmatprep.subr.bf16.mxu0 0
  %602 = vmatpush2.bf16.msra.mxu0 0
  %603 = vmatprep.subr.bf16.mxu0 0
  %604 = vmatpush2.bf16.msra.mxu0 0
  %605 = vmatprep.subr.bf16.mxu0 0
  %606 = vmatpush2.bf16.msra.mxu0 0
  %607 = vmatprep.subr.bf16.mxu0 0
  %608 = vmatpush2.bf16.msra.mxu0 0
  %609 = vmatprep.mubr.bf16.mxu0 0
  %610 = vmatmul.mubr.bf16.gmra.mxu0 %v572
  %v611 = vpop.f32.mrf.mxu0
  %v612 = vadd.f32 0.0, %v611
  %v613 = vpop.f32.mrf.mxu0
  %v614 = vpop.f32.mrf.mxu0
  %v615 = vpop.f32.mrf.mxu0
  %616 = vdwg.mxu0
  %v617 = vpack.c.bf16 %v612, %v564
  %618 = vrot.lane.b32.xlu0 %v118, 32
  %v619 = vpop.permute.xlu0 %618
  %v622 = vsel %vm170, %v617, 0
  %624 = vmatprep.subr.bf16.mxu0 0
  %625 = vmatpush1.bf16.msra.mxu0 0
  %626 = vmatprep.subr.bf16.mxu0 0
  %627 = vmatpush1.bf16.msra.mxu0 0
  %628 = vmatprep.subr.bf16.mxu0 0
  %629 = vmatpush1.bf16.msra.mxu0 0
  %630 = vmatprep.subr.bf16.mxu0 0
  %631 = vmatpush1.bf16.msra.mxu0 0
  %632 = vmatprep.subr.bf16.mxu0 0
  %633 = vmatpush1.bf16.msra.mxu0 0
  %634 = vmatprep.subr.bf16.mxu0 0
  %635 = vmatpush1.bf16.msra.mxu0 0
  %636 = vmatprep.subr.bf16.mxu0 0
  %637 = vmatpush1.bf16.msra.mxu0 0
  %638 = vmatprep.subr.bf16.mxu0 0
  %639 = vmatpush1.bf16.msra.mxu0 %v619
  %640 = vmatprep.subr.bf16.mxu0 0
  %641 = vmatpush2.bf16.msra.mxu0 0
  %642 = vmatprep.subr.bf16.mxu0 0
  %643 = vmatpush2.bf16.msra.mxu0 0
  %644 = vmatprep.subr.bf16.mxu0 0
  %645 = vmatpush2.bf16.msra.mxu0 0
  %646 = vmatprep.subr.bf16.mxu0 0
  %647 = vmatpush2.bf16.msra.mxu0 0
  %648 = vmatprep.subr.bf16.mxu0 0
  %649 = vmatpush2.bf16.msra.mxu0 0
  %650 = vmatprep.subr.bf16.mxu0 0
  %651 = vmatpush2.bf16.msra.mxu0 0
  %652 = vmatprep.subr.bf16.mxu0 0
  %653 = vmatpush2.bf16.msra.mxu0 0
  %654 = vmatprep.subr.bf16.mxu0 0
  %655 = vmatpush2.bf16.msra.mxu0 0
  %656 = vmatprep.mubr.bf16.mxu0 0
  %657 = vmatmul.mubr.bf16.gmra.mxu0 %v622
  %v658 = vpop.f32.mrf.mxu0
  %v659 = vadd.f32 0.0, %v658
  %v660 = vpop.f32.mrf.mxu0
  %v661 = vpop.f32.mrf.mxu0
  %v662 = vadd.f32 0.0, %v661
  %v663 = vpop.f32.mrf.mxu0
  %664 = vdwg.mxu0
  %665 = vrot.lane.b32.xlu0 %v117, 32
  %v666 = vpop.permute.xlu0 %665
  %v669 = vsel %vm170, %v392, 0
  %671 = vmatprep.subr.bf16.mxu0 0
  %672 = vmatpush1.bf16.msra.mxu0 0
  %673 = vmatprep.subr.bf16.mxu0 0
  %674 = vmatpush1.bf16.msra.mxu0 0
  %675 = vmatprep.subr.bf16.mxu0 0
  %676 = vmatpush1.bf16.msra.mxu0 0
  %677 = vmatprep.subr.bf16.mxu0 0
  %678 = vmatpush1.bf16.msra.mxu0 0
  %679 = vmatprep.subr.bf16.mxu0 0
  %680 = vmatpush1.bf16.msra.mxu0 0
  %681 = vmatprep.subr.bf16.mxu0 0
  %682 = vmatpush1.bf16.msra.mxu0 0
  %683 = vmatprep.subr.bf16.mxu0 0
  %684 = vmatpush1.bf16.msra.mxu0 0
  %685 = vmatprep.subr.bf16.mxu0 0
  %686 = vmatpush1.bf16.msra.mxu0 %v666
  %687 = vmatprep.subr.bf16.mxu0 0
  %688 = vmatpush2.bf16.msra.mxu0 0
  %689 = vmatprep.subr.bf16.mxu0 0
  %690 = vmatpush2.bf16.msra.mxu0 0
  %691 = vmatprep.subr.bf16.mxu0 0
  %692 = vmatpush2.bf16.msra.mxu0 0
  %693 = vmatprep.subr.bf16.mxu0 0
  %694 = vmatpush2.bf16.msra.mxu0 0
  %695 = vmatprep.subr.bf16.mxu0 0
  %696 = vmatpush2.bf16.msra.mxu0 0
  %697 = vmatprep.subr.bf16.mxu0 0
  %698 = vmatpush2.bf16.msra.mxu0 0
  %699 = vmatprep.subr.bf16.mxu0 0
  %700 = vmatpush2.bf16.msra.mxu0 0
  %701 = vmatprep.subr.bf16.mxu0 0
  %702 = vmatpush2.bf16.msra.mxu0 0
  %703 = vmatprep.mubr.bf16.mxu0 0
  %704 = vmatmul.mubr.bf16.gmra.mxu0 %v669
  %v705 = vpop.f32.mrf.mxu0
  %v706 = vadd.f32 %v659, %v705
  %v707 = vpop.f32.mrf.mxu0
  %v708 = vpop.f32.mrf.mxu0
  %v709 = vadd.f32 %v662, %v708
  %v710 = vpop.f32.mrf.mxu0
  %711 = vdwg.mxu0
  %v712 = vld [vmem:[%s4 + $0x6] sm:$0x1]
  %v713 = vlaneseq
  %v714 = vshrl.u32 %v713, 7
  %v715 = vsub.s32 0, %v714
  %v716 = vrot.slane %v712, %v715
  %v717 = vadd.f32 %v706, %v716
  %v718 = vadd.f32 %v709, %v716
  %v719 = vadd.f32 %v717, %v63
  %v720 = vadd.f32 %v718, %v64
  %v721 = vld [vmem:[%s4 + $0x7] sm:$0x1]
  %v722 = vld [vmem:[%s4 + $0x8] sm:$0x1]
  %v723 = vsel %vm25, %v719, 0.0
  %724 = vadd.xlane.f32.xlu0 %v723
  %v725 = vpop.xlane.xlu0 %724
  %v726 = vsel %vm25, %v720, 0.0
  %727 = vadd.xlane.f32.xlu0 %v726
  %v728 = vpop.xlane.xlu0 %727
  %v729 = vmul.f32 %v725, %v32
  %v730 = vmul.f32 %v728, %v32
  %v731 = vsub.f32 %v719, %v729
  %v732 = vsub.f32 %v720, %v730
  %v733 = vmul.f32 %v731, %v731
  %v734 = vmul.f32 %v732, %v732
  %v735 = vsel %vm25, %v733, 0.0
  %736 = vadd.xlane.f32.xlu0 %v735
  %v737 = vpop.xlane.xlu0 %736
  %v738 = vsel %vm25, %v734, 0.0
  %739 = vadd.xlane.f32.xlu0 %v738
  %v740 = vpop.xlane.xlu0 %739
  %v741 = vmul.f32 %v737, %v32
  %v742 = vmul.f32 %v740, %v32
  %v743 = vadd.f32 %v741, 1e-12
  %v744 = vadd.f32 %v742, 1e-12
  %v745 = vrsqrt.pop %v743
  %v746 = vrsqrt.pop %v744
  %v747 = vmul.f32 %v731, %v745
  %v748 = vmul.f32 %v732, %v746
  %v749 = vlaneseq
  %v750 = vshrl.u32 %v749, 7
  %v751 = vsub.s32 0, %v750
  %v752 = vrot.slane %v721, %v751
  %v753 = vmul.f32 %v747, %v752
  %v754 = vmul.f32 %v748, %v752
  %v755 = vlaneseq
  %v756 = vshrl.u32 %v755, 7
  %v757 = vsub.s32 0, %v756
  %v758 = vrot.slane %v722, %v757
  %v759 = vadd.f32 %v753, %v758
  %v760 = vadd.f32 %v754, %v758
  %v761 = vpack.c.bf16 %v760, %v759
  %v762 = vld [vmem:[%s4 + $0x9] sm:$0x1]
  %v763 = vlaneseq
  %v764 = vshrl.u32 %v763, 7
  %v765 = vsub.s32 0, %v764
  %v766 = vrot.slane %v762, %v765
  %v767 = vunpack.c.h.b16 %v99
  %v768 = vunpack.c.h.b16 %v100
  %v769 = vunpack.c.h.b16 %v101
  %v770 = vunpack.c.h.b16 %v102
  %v771 = vpack.c.b16 %v768, %v767
  %v772 = vpack.c.b16 %v770, %v769
  %v776 = vsel %vm25, %v761, 0
  %778 = vmatprep.subr.bf16.mxu0 0
  %779 = vmatpush1.bf16.msra.mxu0 0
  %780 = vmatprep.subr.bf16.mxu0 0
  %781 = vmatpush1.bf16.msra.mxu0 0
  %782 = vmatprep.subr.bf16.mxu0 0
  %783 = vmatpush1.bf16.msra.mxu0 0
  %784 = vmatprep.subr.bf16.mxu0 0
  %785 = vmatpush1.bf16.msra.mxu0 0
  %786 = vmatprep.subr.bf16.mxu0 0
  %787 = vmatpush1.bf16.msra.mxu0 0
  %788 = vmatprep.subr.bf16.mxu0 0
  %789 = vmatpush1.bf16.msra.mxu0 0
  %790 = vmatprep.subr.bf16.mxu0 0
  %791 = vmatpush1.bf16.msra.mxu0 %v772
  %792 = vmatprep.subr.bf16.mxu0 0
  %793 = vmatpush1.bf16.msra.mxu0 %v771
  %794 = vmatprep.subr.bf16.mxu0 0
  %795 = vmatpush2.bf16.msra.mxu0 0
  %796 = vmatprep.subr.bf16.mxu0 0
  %797 = vmatpush2.bf16.msra.mxu0 0
  %798 = vmatprep.subr.bf16.mxu0 0
  %799 = vmatpush2.bf16.msra.mxu0 0
  %800 = vmatprep.subr.bf16.mxu0 0
  %801 = vmatpush2.bf16.msra.mxu0 0
  %802 = vmatprep.subr.bf16.mxu0 0
  %803 = vmatpush2.bf16.msra.mxu0 0
  %804 = vmatprep.subr.bf16.mxu0 0
  %805 = vmatpush2.bf16.msra.mxu0 0
  %806 = vmatprep.subr.bf16.mxu0 0
  %807 = vmatpush2.bf16.msra.mxu0 0
  %808 = vmatprep.subr.bf16.mxu0 0
  %809 = vmatpush2.bf16.msra.mxu0 0
  %810 = vmatprep.mubr.bf16.mxu0 0
  %811 = vmatmul.mubr.bf16.gmra.mxu0 %v776
  %v812 = vpop.f32.mrf.mxu0
  %v813 = vadd.f32 %v766, %v812
  %v814 = vpop.f32.mrf.mxu0
  %v815 = vpop.f32.mrf.mxu0
  %v816 = vadd.f32 %v766, %v815
  %v817 = vpop.f32.mrf.mxu0
  %818 = vdwg.mxu0
  %v819 = vmul.f32 %v813, 0.5
  %v820 = vmul.f32 %v816, 0.5
  %v821 = vmul.f32 %v813, 0.044715
  %v822 = vmul.f32 %v816, 0.044715
  %v823 = vmul.f32 %v821, %v813
  %v824 = vmul.f32 %v822, %v816
  %v825 = vmul.f32 %v823, %v813
  %v826 = vmul.f32 %v824, %v816
  %v827 = vadd.f32 %v813, %v825
  %v828 = vadd.f32 %v816, %v826
  %v829 = vmul.f32 %v827, 0.7978846
  %v830 = vmul.f32 %v828, 0.7978846
  %v831 = vtanh.pop %v829
  %v832 = vtanh.pop %v830
  %v833 = vadd.f32 %v831, 1.0
  %v834 = vadd.f32 %v832, 1.0
  %v835 = vmul.f32 %v819, %v833
  %v836 = vmul.f32 %v820, %v834
  %v837 = vld [vmem:[%s3] sm:$0xf]
  %v838 = vld [vmem:[%s3 + $0x4] sm:$0xf]
  %v839 = vld [vmem:[%s3 + $0x8] sm:$0xf]
  %v840 = vld [vmem:[%s3 + $0xc] sm:$0xf]
  %v841 = vld [vmem:[%s3 + $0x10] sm:$0xf]
  %v842 = vld [vmem:[%s3 + $0x14] sm:$0xf]
  %v843 = vld [vmem:[%s3 + $0x18] sm:$0xf]
  %v844 = vld [vmem:[%s3 + $0x1c] sm:$0xf]
  %v845 = vpack.c.bf16 %v836, %v835
  %v846 = vld [vmem:[%s4 + $0xa] sm:$0x1]
  %v847 = vlaneseq
  %v848 = vshrl.u32 %v847, 7
  %v849 = vsub.s32 0, %v848
  %v850 = vrot.slane %v846, %v849
  %v859 = vunpack.c.l.b16 %v837
  %v860 = vunpack.c.l.b16 %v838
  %v861 = vunpack.c.l.b16 %v839
  %v862 = vunpack.c.l.b16 %v840
  %v863 = vunpack.c.l.b16 %v841
  %v864 = vunpack.c.l.b16 %v842
  %v865 = vunpack.c.l.b16 %v843
  %v866 = vunpack.c.l.b16 %v844
  %v867 = vpack.c.b16 %v860, %v859
  %v868 = vpack.c.b16 %v862, %v861
  %v869 = vpack.c.b16 %v864, %v863
  %v870 = vpack.c.b16 %v866, %v865
  %vm875 = vcmask 523264
  %v877 = vsel %vm875, %v845, 0
  %879 = vmatprep.subr.bf16.mxu0 0
  %880 = vmatpush1.bf16.msra.mxu0 0
  %881 = vmatprep.subr.bf16.mxu0 0
  %882 = vmatpush1.bf16.msra.mxu0 0
  %883 = vmatprep.subr.bf16.mxu0 0
  %884 = vmatpush1.bf16.msra.mxu0 0
  %885 = vmatprep.subr.bf16.mxu0 0
  %886 = vmatpush1.bf16.msra.mxu0 0
  %887 = vmatprep.subr.bf16.mxu0 0
  %888 = vmatpush1.bf16.msra.mxu0 %v870
  %889 = vmatprep.subr.bf16.mxu0 0
  %890 = vmatpush1.bf16.msra.mxu0 %v869
  %891 = vmatprep.subr.bf16.mxu0 0
  %892 = vmatpush1.bf16.msra.mxu0 %v868
  %893 = vmatprep.subr.bf16.mxu0 0
  %894 = vmatpush1.bf16.msra.mxu0 %v867
  %895 = vmatprep.subr.bf16.mxu0 0
  %896 = vmatpush2.bf16.msra.mxu0 0
  %897 = vmatprep.subr.bf16.mxu0 0
  %898 = vmatpush2.bf16.msra.mxu0 0
  %899 = vmatprep.subr.bf16.mxu0 0
  %900 = vmatpush2.bf16.msra.mxu0 0
  %901 = vmatprep.subr.bf16.mxu0 0
  %902 = vmatpush2.bf16.msra.mxu0 0
  %903 = vmatprep.subr.bf16.mxu0 0
  %904 = vmatpush2.bf16.msra.mxu0 0
  %905 = vmatprep.subr.bf16.mxu0 0
  %906 = vmatpush2.bf16.msra.mxu0 0
  %907 = vmatprep.subr.bf16.mxu0 0
  %908 = vmatpush2.bf16.msra.mxu0 0
  %909 = vmatprep.subr.bf16.mxu0 0
  %910 = vmatpush2.bf16.msra.mxu0 0
  %911 = vmatprep.mubr.bf16.mxu0 0
  %912 = vmatmul.mubr.bf16.gmra.mxu0 %v877
  %v913 = vpop.f32.mrf.mxu0
  %v914 = vadd.f32 %v850, %v913
  %v915 = vpop.f32.mrf.mxu0
  %v916 = vpop.f32.mrf.mxu0
  %v917 = vadd.f32 %v850, %v916
  %v918 = vpop.f32.mrf.mxu0
  %919 = vdwg.mxu0
  %v920 = vadd.f32 %v914, %v759
  %v921 = vadd.f32 %v917, %v760
  %v922 = vld [vmem:[%s4 + $0xb] sm:$0x1]
  %v923 = vld [vmem:[%s4 + $0xc] sm:$0x1]
  %v924 = vsel %vm25, %v920, 0.0
  %925 = vadd.xlane.f32.xlu0 %v924
  %v926 = vpop.xlane.xlu0 %925
  %v927 = vsel %vm25, %v921, 0.0
  %928 = vadd.xlane.f32.xlu0 %v927
  %v929 = vpop.xlane.xlu0 %928
  %v930 = vmul.f32 %v926, %v32
  %v931 = vmul.f32 %v929, %v32
  %v932 = vsub.f32 %v920, %v930
  %v933 = vsub.f32 %v921, %v931
  %v934 = vmul.f32 %v932, %v932
  %v935 = vmul.f32 %v933, %v933
  %v936 = vsel %vm25, %v934, 0.0
  %937 = vadd.xlane.f32.xlu0 %v936
  %v938 = vpop.xlane.xlu0 %937
  %v939 = vsel %vm25, %v935, 0.0
  %940 = vadd.xlane.f32.xlu0 %v939
  %v941 = vpop.xlane.xlu0 %940
  %v942 = vmul.f32 %v938, %v32
  %v943 = vmul.f32 %v941, %v32
  %v944 = vadd.f32 %v942, 1e-12
  %v945 = vadd.f32 %v943, 1e-12
  %v946 = vrsqrt.pop %v944
  %v947 = vrsqrt.pop %v945
  %v948 = vmul.f32 %v932, %v946
  %v949 = vmul.f32 %v933, %v947
  %v950 = vlaneseq
  %v951 = vshrl.u32 %v950, 7
  %v952 = vsub.s32 0, %v951
  %v953 = vrot.slane %v922, %v952
  %v954 = vmul.f32 %v948, %v953
  %v955 = vmul.f32 %v949, %v953
  %v956 = vlaneseq
  %v957 = vshrl.u32 %v956, 7
  %v958 = vsub.s32 0, %v957
  %v959 = vrot.slane %v923, %v958
  %v960 = vadd.f32 %v954, %v959
  %v961 = vadd.f32 %v955, %v959
  %s962 = scalar_lea.vmem %s2, 32
  %v963 = vld [vmem:[%s962] sm:$0xff]
  %v964 = vld [vmem:[%s962 + $0x8] sm:$0xff]
  %v965 = vld [vmem:[%s962 + $0x10] sm:$0xff]
  %v966 = vld [vmem:[%s962 + $0x18] sm:$0xff]
  %v967 = vpack.c.bf16 %v961, %v960
  %v968 = vld [vmem:[%s4 + $0xd] sm:$0x1]
  %v969 = vlaneseq
  %v970 = vshrl.u32 %v969, 7
  %v971 = vsub.s32 0, %v970
  %v972 = vrot.slane %v968, %v971
  %v977 = vunpack.c.l.b16 %v963
  %v978 = vunpack.c.l.b16 %v964
  %v979 = vunpack.c.l.b16 %v965
  %v980 = vunpack.c.l.b16 %v966
  %v981 = vpack.c.b16 %v978, %v977
  %v982 = vpack.c.b16 %v980, %v979
  %v986 = vsel %vm25, %v967, 0
  %988 = vmatprep.subr.bf16.mxu0 0
  %989 = vmatpush1.bf16.msra.mxu0 0
  %990 = vmatprep.subr.bf16.mxu0 0
  %991 = vmatpush1.bf16.msra.mxu0 0
  %992 = vmatprep.subr.bf16.mxu0 0
  %993 = vmatpush1.bf16.msra.mxu0 0
  %994 = vmatprep.subr.bf16.mxu0 0
  %995 = vmatpush1.bf16.msra.mxu0 0
  %996 = vmatprep.subr.bf16.mxu0 0
  %997 = vmatpush1.bf16.msra.mxu0 0
  %998 = vmatprep.subr.bf16.mxu0 0
  %999 = vmatpush1.bf16.msra.mxu0 0
  %1000 = vmatprep.subr.bf16.mxu0 0
  %1001 = vmatpush1.bf16.msra.mxu0 %v982
  %1002 = vmatprep.subr.bf16.mxu0 0
  %1003 = vmatpush1.bf16.msra.mxu0 %v981
  %1004 = vmatprep.subr.bf16.mxu0 0
  %1005 = vmatpush2.bf16.msra.mxu0 0
  %1006 = vmatprep.subr.bf16.mxu0 0
  %1007 = vmatpush2.bf16.msra.mxu0 0
  %1008 = vmatprep.subr.bf16.mxu0 0
  %1009 = vmatpush2.bf16.msra.mxu0 0
  %1010 = vmatprep.subr.bf16.mxu0 0
  %1011 = vmatpush2.bf16.msra.mxu0 0
  %1012 = vmatprep.subr.bf16.mxu0 0
  %1013 = vmatpush2.bf16.msra.mxu0 0
  %1014 = vmatprep.subr.bf16.mxu0 0
  %1015 = vmatpush2.bf16.msra.mxu0 0
  %1016 = vmatprep.subr.bf16.mxu0 0
  %1017 = vmatpush2.bf16.msra.mxu0 0
  %1018 = vmatprep.subr.bf16.mxu0 0
  %1019 = vmatpush2.bf16.msra.mxu0 0
  %1020 = vmatprep.mubr.bf16.mxu0 0
  %1021 = vmatmul.mubr.bf16.gmra.mxu0 %v986
  %v1022 = vpop.f32.mrf.mxu0
  %v1023 = vadd.f32 %v972, %v1022
  %v1024 = vpop.f32.mrf.mxu0
  %v1025 = vpop.f32.mrf.mxu0
  %v1026 = vadd.f32 %v972, %v1025
  %v1027 = vpop.f32.mrf.mxu0
  %1028 = vdwg.mxu0
  %v1029 = vpack.c.bf16 %v1023, %v1023
  %v1030 = vpack.c.bf16 %v1026, %v1026
  %1032 = vrot.lane.b32.xlu0 %v1029, 96
  %v1033 = vpop.permute.xlu0 %1032
  %v1035 = vsel %vm170, %v1029, 0
  %v1038 = vsel %vm170, %v1033, 0
  %1040 = vmatprep.subr.bf16.mxu0 0
  %1041 = vmatpush1.bf16.xpose.msra.mxu0 0
  %1042 = vmatprep.subr.bf16.mxu0 0
  %1043 = vmatpush1.bf16.xpose.msra.mxu0 0
  %1044 = vmatprep.subr.bf16.mxu0 0
  %1045 = vmatpush1.bf16.xpose.msra.mxu0 0
  %1046 = vmatprep.subr.bf16.mxu0 0
  %1047 = vmatpush1.bf16.xpose.msra.mxu0 0
  %1048 = vmatprep.subr.bf16.mxu0 0
  %1049 = vmatpush1.bf16.xpose.msra.mxu0 0
  %1050 = vmatprep.subr.bf16.mxu0 0
  %1051 = vmatpush1.bf16.xpose.msra.mxu0 0
  %1052 = vmatprep.subr.bf16.mxu0 0
  %1053 = vmatpush1.bf16.xpose.msra.mxu0 0
  %1054 = vmatprep.subr.bf16.mxu0 0
  %1055 = vmatpush1.bf16.xpose.msra.mxu0 %v1038
  %1056 = vmatprep.subr.bf16.mxu0 0
  %1057 = vmatpush2.bf16.xpose.msra.mxu0 0
  %1058 = vmatprep.subr.bf16.mxu0 0
  %1059 = vmatpush2.bf16.xpose.msra.mxu0 0
  %1060 = vmatprep.subr.bf16.mxu0 0
  %1061 = vmatpush2.bf16.xpose.msra.mxu0 0
  %1062 = vmatprep.subr.bf16.mxu0 0
  %1063 = vmatpush2.bf16.xpose.msra.mxu0 0
  %1064 = vmatprep.subr.bf16.mxu0 0
  %1065 = vmatpush2.bf16.xpose.msra.mxu0 0
  %1066 = vmatprep.subr.bf16.mxu0 0
  %1067 = vmatpush2.bf16.xpose.msra.mxu0 0
  %1068 = vmatprep.subr.bf16.mxu0 0
  %1069 = vmatpush2.bf16.xpose.msra.mxu0 0
  %1070 = vmatprep.subr.bf16.mxu0 0
  %1071 = vmatpush2.bf16.xpose.msra.mxu0 0
  %1072 = vmatprep.mubr.bf16.mxu0 0
  %1073 = vmatmul.mubr.bf16.gmra.mxu0 %v1035
  %v1074 = vpop.f32.mrf.mxu0
  %v1075 = vadd.f32 0.0, %v1074
  %v1076 = vpop.f32.mrf.mxu0
  %v1077 = vpop.f32.mrf.mxu0
  %v1078 = vpop.f32.mrf.mxu0
  %1079 = vdwg.mxu0
  %1081 = vrot.lane.b32.xlu0 %v1030, 96
  %v1082 = vpop.permute.xlu0 %1081
  %v1084 = vsel %vm170, %v1030, 0
  %v1087 = vsel %vm170, %v1082, 0
  %1089 = vmatprep.subr.bf16.mxu0 0
  %1090 = vmatpush1.bf16.xpose.msra.mxu0 0
  %1091 = vmatprep.subr.bf16.mxu0 0
  %1092 = vmatpush1.bf16.xpose.msra.mxu0 0
  %1093 = vmatprep.subr.bf16.mxu0 0
  %1094 = vmatpush1.bf16.xpose.msra.mxu0 0
  %1095 = vmatprep.subr.bf16.mxu0 0
  %1096 = vmatpush1.bf16.xpose.msra.mxu0 0
  %1097 = vmatprep.subr.bf16.mxu0 0
  %1098 = vmatpush1.bf16.xpose.msra.mxu0 0
  %1099 = vmatprep.subr.bf16.mxu0 0
  %1100 = vmatpush1.bf16.xpose.msra.mxu0 0
  %1101 = vmatprep.subr.bf16.mxu0 0
  %1102 = vmatpush1.bf16.xpose.msra.mxu0 0
  %1103 = vmatprep.subr.bf16.mxu0 0
  %1104 = vmatpush1.bf16.xpose.msra.mxu0 %v1087
  %1105 = vmatprep.subr.bf16.mxu0 0
  %1106 = vmatpush2.bf16.xpose.msra.mxu0 0
  %1107 = vmatprep.subr.bf16.mxu0 0
  %1108 = vmatpush2.bf16.xpose.msra.mxu0 0
  %1109 = vmatprep.subr.bf16.mxu0 0
  %1110 = vmatpush2.bf16.xpose.msra.mxu0 0
  %1111 = vmatprep.subr.bf16.mxu0 0
  %1112 = vmatpush2.bf16.xpose.msra.mxu0 0
  %1113 = vmatprep.subr.bf16.mxu0 0
  %1114 = vmatpush2.bf16.xpose.msra.mxu0 0
  %1115 = vmatprep.subr.bf16.mxu0 0
  %1116 = vmatpush2.bf16.xpose.msra.mxu0 0
  %1117 = vmatprep.subr.bf16.mxu0 0
  %1118 = vmatpush2.bf16.xpose.msra.mxu0 0
  %1119 = vmatprep.subr.bf16.mxu0 0
  %1120 = vmatpush2.bf16.xpose.msra.mxu0 0
  %1121 = vmatprep.mubr.bf16.mxu0 0
  %1122 = vmatmul.mubr.bf16.gmra.mxu0 %v1084
  %v1123 = vpop.f32.mrf.mxu0
  %v1124 = vadd.f32 0.0, %v1123
  %v1125 = vpop.f32.mrf.mxu0
  %v1126 = vpop.f32.mrf.mxu0
  %v1127 = vpop.f32.mrf.mxu0
  %1128 = vdwg.mxu0
  %v1129 = vmul.f32 %v1075, 0.25
  %v1130 = vmul.f32 %v1124, 0.25
  %v1131 = vadd.f32 %v1129, %v92
  %v1132 = vadd.f32 %v1130, %v96
  %v1133 = vsel %vm270, %v1131, -inf
  %1134 = vmax.xlane.f32.xlu0 %v1133
  %v1135 = vpop.xlane.xlu0 %1134
  %v1136 = vsel %vm270, %v1132, -inf
  %1137 = vmax.xlane.f32.xlu0 %v1136
  %v1138 = vpop.xlane.xlu0 %1137
  %v1139 = vsub.f32 %v1131, %v1135
  %v1140 = vsub.f32 %v1132, %v1138
  %v1141 = vmul.f32 %v1139, 1.442695
  %v1142 = vpow.pop %v1141
  %v1143 = vmul.f32 %v1140, 1.442695
  %v1144 = vpow.pop %v1143
  %v1145 = vsel %vm270, %v1142, 0.0
  %1146 = vadd.xlane.f32.xlu0 %v1145
  %v1147 = vpop.xlane.xlu0 %1146
  %v1148 = vsel %vm270, %v1144, 0.0
  %1149 = vadd.xlane.f32.xlu0 %v1148
  %v1150 = vpop.xlane.xlu0 %1149
  %v1151 = vrcp.pop %v1147
  %v1152 = vrcp.pop %v1150
  %v1153 = vmul.f32 %v1142, %v1151
  %v1154 = vmul.f32 %v1144, %v1152
  %v1155 = vpack.c.bf16 %v1153, %v1153
  %v1156 = vpack.c.bf16 %v1154, %v1154
  %1157 = vrot.lane.b32.xlu0 %v1029, 64
  %v1158 = vpop.permute.xlu0 %1157
  %v1160 = vsel %vm270, %v1155, 0
  %v1163 = vsel %vm300, %v1158, 0
  %1165 = vmatprep.subr.bf16.mxu0 0
  %1166 = vmatpush1.bf16.msra.mxu0 0
  %1167 = vmatprep.subr.bf16.mxu0 0
  %1168 = vmatpush1.bf16.msra.mxu0 0
  %1169 = vmatprep.subr.bf16.mxu0 0
  %1170 = vmatpush1.bf16.msra.mxu0 0
  %1171 = vmatprep.subr.bf16.mxu0 0
  %1172 = vmatpush1.bf16.msra.mxu0 0
  %1173 = vmatprep.subr.bf16.mxu0 0
  %1174 = vmatpush1.bf16.msra.mxu0 0
  %1175 = vmatprep.subr.bf16.mxu0 0
  %1176 = vmatpush1.bf16.msra.mxu0 0
  %1177 = vmatprep.subr.bf16.mxu0 0
  %1178 = vmatpush1.bf16.msra.mxu0 0
  %1179 = vmatprep.subr.bf16.mxu0 0
  %1180 = vmatpush1.bf16.msra.mxu0 %v1163
  %1181 = vmatprep.subr.bf16.mxu0 0
  %1182 = vmatpush2.bf16.msra.mxu0 0
  %1183 = vmatprep.subr.bf16.mxu0 0
  %1184 = vmatpush2.bf16.msra.mxu0 0
  %1185 = vmatprep.subr.bf16.mxu0 0
  %1186 = vmatpush2.bf16.msra.mxu0 0
  %1187 = vmatprep.subr.bf16.mxu0 0
  %1188 = vmatpush2.bf16.msra.mxu0 0
  %1189 = vmatprep.subr.bf16.mxu0 0
  %1190 = vmatpush2.bf16.msra.mxu0 0
  %1191 = vmatprep.subr.bf16.mxu0 0
  %1192 = vmatpush2.bf16.msra.mxu0 0
  %1193 = vmatprep.subr.bf16.mxu0 0
  %1194 = vmatpush2.bf16.msra.mxu0 0
  %1195 = vmatprep.subr.bf16.mxu0 0
  %1196 = vmatpush2.bf16.msra.mxu0 0
  %1197 = vmatprep.mubr.bf16.mxu0 0
  %1198 = vmatmul.mubr.bf16.gmra.mxu0 %v1160
  %v1199 = vpop.f32.mrf.mxu0
  %v1200 = vadd.f32 0.0, %v1199
  %v1201 = vpop.f32.mrf.mxu0
  %v1202 = vpop.f32.mrf.mxu0
  %v1203 = vpop.f32.mrf.mxu0
  %1204 = vdwg.mxu0
  %1205 = vrot.lane.b32.xlu0 %v1030, 64
  %v1206 = vpop.permute.xlu0 %1205
  %v1208 = vsel %vm270, %v1156, 0
  %v1211 = vsel %vm300, %v1206, 0
  %1213 = vmatprep.subr.bf16.mxu0 0
  %1214 = vmatpush1.bf16.msra.mxu0 0
  %1215 = vmatprep.subr.bf16.mxu0 0
  %1216 = vmatpush1.bf16.msra.mxu0 0
  %1217 = vmatprep.subr.bf16.mxu0 0
  %1218 = vmatpush1.bf16.msra.mxu0 0
  %1219 = vmatprep.subr.bf16.mxu0 0
  %1220 = vmatpush1.bf16.msra.mxu0 0
  %1221 = vmatprep.subr.bf16.mxu0 0
  %1222 = vmatpush1.bf16.msra.mxu0 0
  %1223 = vmatprep.subr.bf16.mxu0 0
  %1224 = vmatpush1.bf16.msra.mxu0 0
  %1225 = vmatprep.subr.bf16.mxu0 0
  %1226 = vmatpush1.bf16.msra.mxu0 0
  %1227 = vmatprep.subr.bf16.mxu0 0
  %1228 = vmatpush1.bf16.msra.mxu0 %v1211
  %1229 = vmatprep.subr.bf16.mxu0 0
  %1230 = vmatpush2.bf16.msra.mxu0 0
  %1231 = vmatprep.subr.bf16.mxu0 0
  %1232 = vmatpush2.bf16.msra.mxu0 0
  %1233 = vmatprep.subr.bf16.mxu0 0
  %1234 = vmatpush2.bf16.msra.mxu0 0
  %1235 = vmatprep.subr.bf16.mxu0 0
  %1236 = vmatpush2.bf16.msra.mxu0 0
  %1237 = vmatprep.subr.bf16.mxu0 0
  %1238 = vmatpush2.bf16.msra.mxu0 0
  %1239 = vmatprep.subr.bf16.mxu0 0
  %1240 = vmatpush2.bf16.msra.mxu0 0
  %1241 = vmatprep.subr.bf16.mxu0 0
  %1242 = vmatpush2.bf16.msra.mxu0 0
  %1243 = vmatprep.subr.bf16.mxu0 0
  %1244 = vmatpush2.bf16.msra.mxu0 0
  %1245 = vmatprep.mubr.bf16.mxu0 0
  %1246 = vmatmul.mubr.bf16.gmra.mxu0 %v1208
  %v1247 = vpop.f32.mrf.mxu0
  %v1248 = vadd.f32 0.0, %v1247
  %v1249 = vpop.f32.mrf.mxu0
  %v1250 = vpop.f32.mrf.mxu0
  %v1251 = vpop.f32.mrf.mxu0
  %1252 = vdwg.mxu0
  %v1253 = vpack.c.bf16 %v1248, %v1200
  %1254 = vrot.lane.b32.xlu0 %v1029, 112
  %v1255 = vpop.permute.xlu0 %1254
  %1256 = vrot.lane.b32.xlu0 %v1029, 80
  %v1257 = vpop.permute.xlu0 %1256
  %v1259 = vsel %vm170, %v1255, 0
  %v1262 = vsel %vm170, %v1257, 0
  %1264 = vmatprep.subr.bf16.mxu0 0
  %1265 = vmatpush1.bf16.xpose.msra.mxu0 0
  %1266 = vmatprep.subr.bf16.mxu0 0
  %1267 = vmatpush1.bf16.xpose.msra.mxu0 0
  %1268 = vmatprep.subr.bf16.mxu0 0
  %1269 = vmatpush1.bf16.xpose.msra.mxu0 0
  %1270 = vmatprep.subr.bf16.mxu0 0
  %1271 = vmatpush1.bf16.xpose.msra.mxu0 0
  %1272 = vmatprep.subr.bf16.mxu0 0
  %1273 = vmatpush1.bf16.xpose.msra.mxu0 0
  %1274 = vmatprep.subr.bf16.mxu0 0
  %1275 = vmatpush1.bf16.xpose.msra.mxu0 0
  %1276 = vmatprep.subr.bf16.mxu0 0
  %1277 = vmatpush1.bf16.xpose.msra.mxu0 0
  %1278 = vmatprep.subr.bf16.mxu0 0
  %1279 = vmatpush1.bf16.xpose.msra.mxu0 %v1262
  %1280 = vmatprep.subr.bf16.mxu0 0
  %1281 = vmatpush2.bf16.xpose.msra.mxu0 0
  %1282 = vmatprep.subr.bf16.mxu0 0
  %1283 = vmatpush2.bf16.xpose.msra.mxu0 0
  %1284 = vmatprep.subr.bf16.mxu0 0
  %1285 = vmatpush2.bf16.xpose.msra.mxu0 0
  %1286 = vmatprep.subr.bf16.mxu0 0
  %1287 = vmatpush2.bf16.xpose.msra.mxu0 0
  %1288 = vmatprep.subr.bf16.mxu0 0
  %1289 = vmatpush2.bf16.xpose.msra.mxu0 0
  %1290 = vmatprep.subr.bf16.mxu0 0
  %1291 = vmatpush2.bf16.xpose.msra.mxu0 0
  %1292 = vmatprep.subr.bf16.mxu0 0
  %1293 = vmatpush2.bf16.xpose.msra.mxu0 0
  %1294 = vmatprep.subr.bf16.mxu0 0
  %1295 = vmatpush2.bf16.xpose.msra.mxu0 0
  %1296 = vmatprep.mubr.bf16.mxu0 0
  %1297 = vmatmul.mubr.bf16.gmra.mxu0 %v1259
  %v1298 = vpop.f32.mrf.mxu0
  %v1299 = vadd.f32 0.0, %v1298
  %v1300 = vpop.f32.mrf.mxu0
  %v1301 = vpop.f32.mrf.mxu0
  %v1302 = vpop.f32.mrf.mxu0
  %1303 = vdwg.mxu0
  %1304 = vrot.lane.b32.xlu0 %v1030, 112
  %v1305 = vpop.permute.xlu0 %1304
  %1306 = vrot.lane.b32.xlu0 %v1030, 80
  %v1307 = vpop.permute.xlu0 %1306
  %v1309 = vsel %vm170, %v1305, 0
  %v1312 = vsel %vm170, %v1307, 0
  %1314 = vmatprep.subr.bf16.mxu0 0
  %1315 = vmatpush1.bf16.xpose.msra.mxu0 0
  %1316 = vmatprep.subr.bf16.mxu0 0
  %1317 = vmatpush1.bf16.xpose.msra.mxu0 0
  %1318 = vmatprep.subr.bf16.mxu0 0
  %1319 = vmatpush1.bf16.xpose.msra.mxu0 0
  %1320 = vmatprep.subr.bf16.mxu0 0
  %1321 = vmatpush1.bf16.xpose.msra.mxu0 0
  %1322 = vmatprep.subr.bf16.mxu0 0
  %1323 = vmatpush1.bf16.xpose.msra.mxu0 0
  %1324 = vmatprep.subr.bf16.mxu0 0
  %1325 = vmatpush1.bf16.xpose.msra.mxu0 0
  %1326 = vmatprep.subr.bf16.mxu0 0
  %1327 = vmatpush1.bf16.xpose.msra.mxu0 0
  %1328 = vmatprep.subr.bf16.mxu0 0
  %1329 = vmatpush1.bf16.xpose.msra.mxu0 %v1312
  %1330 = vmatprep.subr.bf16.mxu0 0
  %1331 = vmatpush2.bf16.xpose.msra.mxu0 0
  %1332 = vmatprep.subr.bf16.mxu0 0
  %1333 = vmatpush2.bf16.xpose.msra.mxu0 0
  %1334 = vmatprep.subr.bf16.mxu0 0
  %1335 = vmatpush2.bf16.xpose.msra.mxu0 0
  %1336 = vmatprep.subr.bf16.mxu0 0
  %1337 = vmatpush2.bf16.xpose.msra.mxu0 0
  %1338 = vmatprep.subr.bf16.mxu0 0
  %1339 = vmatpush2.bf16.xpose.msra.mxu0 0
  %1340 = vmatprep.subr.bf16.mxu0 0
  %1341 = vmatpush2.bf16.xpose.msra.mxu0 0
  %1342 = vmatprep.subr.bf16.mxu0 0
  %1343 = vmatpush2.bf16.xpose.msra.mxu0 0
  %1344 = vmatprep.subr.bf16.mxu0 0
  %1345 = vmatpush2.bf16.xpose.msra.mxu0 0
  %1346 = vmatprep.mubr.bf16.mxu0 0
  %1347 = vmatmul.mubr.bf16.gmra.mxu0 %v1309
  %v1348 = vpop.f32.mrf.mxu0
  %v1349 = vadd.f32 0.0, %v1348
  %v1350 = vpop.f32.mrf.mxu0
  %v1351 = vpop.f32.mrf.mxu0
  %v1352 = vpop.f32.mrf.mxu0
  %1353 = vdwg.mxu0
  %v1354 = vmul.f32 %v1299, 0.25
  %v1355 = vmul.f32 %v1349, 0.25
  %v1356 = vadd.f32 %v1354, %v92
  %v1357 = vadd.f32 %v1355, %v96
  %v1358 = vsel %vm270, %v1356, -inf
  %1359 = vmax.xlane.f32.xlu0 %v1358
  %v1360 = vpop.xlane.xlu0 %1359
  %v1361 = vsel %vm270, %v1357, -inf
  %1362 = vmax.xlane.f32.xlu0 %v1361
  %v1363 = vpop.xlane.xlu0 %1362
  %v1364 = vsub.f32 %v1356, %v1360
  %v1365 = vsub.f32 %v1357, %v1363
  %v1366 = vmul.f32 %v1364, 1.442695
  %v1367 = vpow.pop %v1366
  %v1368 = vmul.f32 %v1365, 1.442695
  %v1369 = vpow.pop %v1368
  %v1370 = vsel %vm270, %v1367, 0.0
  %1371 = vadd.xlane.f32.xlu0 %v1370
  %v1372 = vpop.xlane.xlu0 %1371
  %v1373 = vsel %vm270, %v1369, 0.0
  %1374 = vadd.xlane.f32.xlu0 %v1373
  %v1375 = vpop.xlane.xlu0 %1374
  %v1376 = vrcp.pop %v1372
  %v1377 = vrcp.pop %v1375
  %v1378 = vmul.f32 %v1367, %v1376
  %v1379 = vmul.f32 %v1369, %v1377
  %v1380 = vpack.c.bf16 %v1378, %v1378
  %v1381 = vpack.c.bf16 %v1379, %v1379
  %1382 = vrot.lane.b32.xlu0 %v1029, 48
  %v1383 = vpop.permute.xlu0 %1382
  %v1385 = vsel %vm270, %v1380, 0
  %v1388 = vsel %vm300, %v1383, 0
  %1390 = vmatprep.subr.bf16.mxu0 0
  %1391 = vmatpush1.bf16.msra.mxu0 0
  %1392 = vmatprep.subr.bf16.mxu0 0
  %1393 = vmatpush1.bf16.msra.mxu0 0
  %1394 = vmatprep.subr.bf16.mxu0 0
  %1395 = vmatpush1.bf16.msra.mxu0 0
  %1396 = vmatprep.subr.bf16.mxu0 0
  %1397 = vmatpush1.bf16.msra.mxu0 0
  %1398 = vmatprep.subr.bf16.mxu0 0
  %1399 = vmatpush1.bf16.msra.mxu0 0
  %1400 = vmatprep.subr.bf16.mxu0 0
  %1401 = vmatpush1.bf16.msra.mxu0 0
  %1402 = vmatprep.subr.bf16.mxu0 0
  %1403 = vmatpush1.bf16.msra.mxu0 0
  %1404 = vmatprep.subr.bf16.mxu0 0
  %1405 = vmatpush1.bf16.msra.mxu0 %v1388
  %1406 = vmatprep.subr.bf16.mxu0 0
  %1407 = vmatpush2.bf16.msra.mxu0 0
  %1408 = vmatprep.subr.bf16.mxu0 0
  %1409 = vmatpush2.bf16.msra.mxu0 0
  %1410 = vmatprep.subr.bf16.mxu0 0
  %1411 = vmatpush2.bf16.msra.mxu0 0
  %1412 = vmatprep.subr.bf16.mxu0 0
  %1413 = vmatpush2.bf16.msra.mxu0 0
  %1414 = vmatprep.subr.bf16.mxu0 0
  %1415 = vmatpush2.bf16.msra.mxu0 0
  %1416 = vmatprep.subr.bf16.mxu0 0
  %1417 = vmatpush2.bf16.msra.mxu0 0
  %1418 = vmatprep.subr.bf16.mxu0 0
  %1419 = vmatpush2.bf16.msra.mxu0 0
  %1420 = vmatprep.subr.bf16.mxu0 0
  %1421 = vmatpush2.bf16.msra.mxu0 0
  %1422 = vmatprep.mubr.bf16.mxu0 0
  %1423 = vmatmul.mubr.bf16.gmra.mxu0 %v1385
  %v1424 = vpop.f32.mrf.mxu0
  %v1425 = vadd.f32 0.0, %v1424
  %v1426 = vpop.f32.mrf.mxu0
  %v1427 = vpop.f32.mrf.mxu0
  %v1428 = vpop.f32.mrf.mxu0
  %1429 = vdwg.mxu0
  %1430 = vrot.lane.b32.xlu0 %v1030, 48
  %v1431 = vpop.permute.xlu0 %1430
  %v1433 = vsel %vm270, %v1381, 0
  %v1436 = vsel %vm300, %v1431, 0
  %1438 = vmatprep.subr.bf16.mxu0 0
  %1439 = vmatpush1.bf16.msra.mxu0 0
  %1440 = vmatprep.subr.bf16.mxu0 0
  %1441 = vmatpush1.bf16.msra.mxu0 0
  %1442 = vmatprep.subr.bf16.mxu0 0
  %1443 = vmatpush1.bf16.msra.mxu0 0
  %1444 = vmatprep.subr.bf16.mxu0 0
  %1445 = vmatpush1.bf16.msra.mxu0 0
  %1446 = vmatprep.subr.bf16.mxu0 0
  %1447 = vmatpush1.bf16.msra.mxu0 0
  %1448 = vmatprep.subr.bf16.mxu0 0
  %1449 = vmatpush1.bf16.msra.mxu0 0
  %1450 = vmatprep.subr.bf16.mxu0 0
  %1451 = vmatpush1.bf16.msra.mxu0 0
  %1452 = vmatprep.subr.bf16.mxu0 0
  %1453 = vmatpush1.bf16.msra.mxu0 %v1436
  %1454 = vmatprep.subr.bf16.mxu0 0
  %1455 = vmatpush2.bf16.msra.mxu0 0
  %1456 = vmatprep.subr.bf16.mxu0 0
  %1457 = vmatpush2.bf16.msra.mxu0 0
  %1458 = vmatprep.subr.bf16.mxu0 0
  %1459 = vmatpush2.bf16.msra.mxu0 0
  %1460 = vmatprep.subr.bf16.mxu0 0
  %1461 = vmatpush2.bf16.msra.mxu0 0
  %1462 = vmatprep.subr.bf16.mxu0 0
  %1463 = vmatpush2.bf16.msra.mxu0 0
  %1464 = vmatprep.subr.bf16.mxu0 0
  %1465 = vmatpush2.bf16.msra.mxu0 0
  %1466 = vmatprep.subr.bf16.mxu0 0
  %1467 = vmatpush2.bf16.msra.mxu0 0
  %1468 = vmatprep.subr.bf16.mxu0 0
  %1469 = vmatpush2.bf16.msra.mxu0 0
  %1470 = vmatprep.mubr.bf16.mxu0 0
  %1471 = vmatmul.mubr.bf16.gmra.mxu0 %v1433
  %v1472 = vpop.f32.mrf.mxu0
  %v1473 = vadd.f32 0.0, %v1472
  %v1474 = vpop.f32.mrf.mxu0
  %v1475 = vpop.f32.mrf.mxu0
  %v1476 = vpop.f32.mrf.mxu0
  %1477 = vdwg.mxu0
  %v1478 = vpack.c.bf16 %v1473, %v1425
  %1479 = vrot.lane.b32.xlu0 %v982, 32
  %v1480 = vpop.permute.xlu0 %1479
  %v1483 = vsel %vm170, %v1478, 0
  %1485 = vmatprep.subr.bf16.mxu0 0
  %1486 = vmatpush1.bf16.msra.mxu0 0
  %1487 = vmatprep.subr.bf16.mxu0 0
  %1488 = vmatpush1.bf16.msra.mxu0 0
  %1489 = vmatprep.subr.bf16.mxu0 0
  %1490 = vmatpush1.bf16.msra.mxu0 0
  %1491 = vmatprep.subr.bf16.mxu0 0
  %1492 = vmatpush1.bf16.msra.mxu0 0
  %1493 = vmatprep.subr.bf16.mxu0 0
  %1494 = vmatpush1.bf16.msra.mxu0 0
  %1495 = vmatprep.subr.bf16.mxu0 0
  %1496 = vmatpush1.bf16.msra.mxu0 0
  %1497 = vmatprep.subr.bf16.mxu0 0
  %1498 = vmatpush1.bf16.msra.mxu0 0
  %1499 = vmatprep.subr.bf16.mxu0 0
  %1500 = vmatpush1.bf16.msra.mxu0 %v1480
  %1501 = vmatprep.subr.bf16.mxu0 0
  %1502 = vmatpush2.bf16.msra.mxu0 0
  %1503 = vmatprep.subr.bf16.mxu0 0
  %1504 = vmatpush2.bf16.msra.mxu0 0
  %1505 = vmatprep.subr.bf16.mxu0 0
  %1506 = vmatpush2.bf16.msra.mxu0 0
  %1507 = vmatprep.subr.bf16.mxu0 0
  %1508 = vmatpush2.bf16.msra.mxu0 0
  %1509 = vmatprep.subr.bf16.mxu0 0
  %1510 = vmatpush2.bf16.msra.mxu0 0
  %1511 = vmatprep.subr.bf16.mxu0 0
  %1512 = vmatpush2.bf16.msra.mxu0 0
  %1513 = vmatprep.subr.bf16.mxu0 0
  %1514 = vmatpush2.bf16.msra.mxu0 0
  %1515 = vmatprep.subr.bf16.mxu0 0
  %1516 = vmatpush2.bf16.msra.mxu0 0
  %1517 = vmatprep.mubr.bf16.mxu0 0
  %1518 = vmatmul.mubr.bf16.gmra.mxu0 %v1483
  %v1519 = vpop.f32.mrf.mxu0
  %v1520 = vadd.f32 0.0, %v1519
  %v1521 = vpop.f32.mrf.mxu0
  %v1522 = vpop.f32.mrf.mxu0
  %v1523 = vadd.f32 0.0, %v1522
  %v1524 = vpop.f32.mrf.mxu0
  %1525 = vdwg.mxu0
  %1526 = vrot.lane.b32.xlu0 %v981, 32
  %v1527 = vpop.permute.xlu0 %1526
  %v1530 = vsel %vm170, %v1253, 0
  %1532 = vmatprep.subr.bf16.mxu0 0
  %1533 = vmatpush1.bf16.msra.mxu0 0
  %1534 = vmatprep.subr.bf16.mxu0 0
  %1535 = vmatpush1.bf16.msra.mxu0 0
  %1536 = vmatprep.subr.bf16.mxu0 0
  %1537 = vmatpush1.bf16.msra.mxu0 0
  %1538 = vmatprep.subr.bf16.mxu0 0
  %1539 = vmatpush1.bf16.msra.mxu0 0
  %1540 = vmatprep.subr.bf16.mxu0 0
  %1541 = vmatpush1.bf16.msra.mxu0 0
  %1542 = vmatprep.subr.bf16.mxu0 0
  %1543 = vmatpush1.bf16.msra.mxu0 0
  %1544 = vmatprep.subr.bf16.mxu0 0
  %1545 = vmatpush1.bf16.msra.mxu0 0
  %1546 = vmatprep.subr.bf16.mxu0 0
  %1547 = vmatpush1.bf16.msra.mxu0 %v1527
  %1548 = vmatprep.subr.bf16.mxu0 0
  %1549 = vmatpush2.bf16.msra.mxu0 0
  %1550 = vmatprep.subr.bf16.mxu0 0
  %1551 = vmatpush2.bf16.msra.mxu0 0
  %1552 = vmatprep.subr.bf16.mxu0 0
  %1553 = vmatpush2.bf16.msra.mxu0 0
  %1554 = vmatprep.subr.bf16.mxu0 0
  %1555 = vmatpush2.bf16.msra.mxu0 0
  %1556 = vmatprep.subr.bf16.mxu0 0
  %1557 = vmatpush2.bf16.msra.mxu0 0
  %1558 = vmatprep.subr.bf16.mxu0 0
  %1559 = vmatpush2.bf16.msra.mxu0 0
  %1560 = vmatprep.subr.bf16.mxu0 0
  %1561 = vmatpush2.bf16.msra.mxu0 0
  %1562 = vmatprep.subr.bf16.mxu0 0
  %1563 = vmatpush2.bf16.msra.mxu0 0
  %1564 = vmatprep.mubr.bf16.mxu0 0
  %1565 = vmatmul.mubr.bf16.gmra.mxu0 %v1530
  %v1566 = vpop.f32.mrf.mxu0
  %v1567 = vadd.f32 %v1520, %v1566
  %v1568 = vpop.f32.mrf.mxu0
  %v1569 = vpop.f32.mrf.mxu0
  %v1570 = vadd.f32 %v1523, %v1569
  %v1571 = vpop.f32.mrf.mxu0
  %1572 = vdwg.mxu0
  %v1573 = vld [vmem:[%s4 + $0xe] sm:$0x1]
  %v1574 = vlaneseq
  %v1575 = vshrl.u32 %v1574, 7
  %v1576 = vsub.s32 0, %v1575
  %v1577 = vrot.slane %v1573, %v1576
  %v1578 = vadd.f32 %v1567, %v1577
  %v1579 = vadd.f32 %v1570, %v1577
  %v1580 = vadd.f32 %v1578, %v960
  %v1581 = vadd.f32 %v1579, %v961
  %v1582 = vld [vmem:[%s4 + $0xf] sm:$0x1]
  %v1583 = vld [vmem:[%s4 + $0x10] sm:$0x1]
  %v1584 = vsel %vm25, %v1580, 0.0
  %1585 = vadd.xlane.f32.xlu0 %v1584
  %v1586 = vpop.xlane.xlu0 %1585
  %v1587 = vsel %vm25, %v1581, 0.0
  %1588 = vadd.xlane.f32.xlu0 %v1587
  %v1589 = vpop.xlane.xlu0 %1588
  %v1590 = vmul.f32 %v1586, %v32
  %v1591 = vmul.f32 %v1589, %v32
  %v1592 = vsub.f32 %v1580, %v1590
  %v1593 = vsub.f32 %v1581, %v1591
  %v1594 = vmul.f32 %v1592, %v1592
  %v1595 = vmul.f32 %v1593, %v1593
  %v1596 = vsel %vm25, %v1594, 0.0
  %1597 = vadd.xlane.f32.xlu0 %v1596
  %v1598 = vpop.xlane.xlu0 %1597
  %v1599 = vsel %vm25, %v1595, 0.0
  %1600 = vadd.xlane.f32.xlu0 %v1599
  %v1601 = vpop.xlane.xlu0 %1600
  %v1602 = vmul.f32 %v1598, %v32
  %v1603 = vmul.f32 %v1601, %v32
  %v1604 = vadd.f32 %v1602, 1e-12
  %v1605 = vadd.f32 %v1603, 1e-12
  %v1606 = vrsqrt.pop %v1604
  %v1607 = vrsqrt.pop %v1605
  %v1608 = vmul.f32 %v1592, %v1606
  %v1609 = vmul.f32 %v1593, %v1607
  %v1610 = vlaneseq
  %v1611 = vshrl.u32 %v1610, 7
  %v1612 = vsub.s32 0, %v1611
  %v1613 = vrot.slane %v1582, %v1612
  %v1614 = vmul.f32 %v1608, %v1613
  %v1615 = vmul.f32 %v1609, %v1613
  %v1616 = vlaneseq
  %v1617 = vshrl.u32 %v1616, 7
  %v1618 = vsub.s32 0, %v1617
  %v1619 = vrot.slane %v1583, %v1618
  %v1620 = vadd.f32 %v1614, %v1619
  %v1621 = vadd.f32 %v1615, %v1619
  %v1622 = vpack.c.bf16 %v1621, %v1620
  %v1623 = vld [vmem:[%s4 + $0x11] sm:$0x1]
  %v1624 = vlaneseq
  %v1625 = vshrl.u32 %v1624, 7
  %v1626 = vsub.s32 0, %v1625
  %v1627 = vrot.slane %v1623, %v1626
  %v1628 = vunpack.c.h.b16 %v963
  %v1629 = vunpack.c.h.b16 %v964
  %v1630 = vunpack.c.h.b16 %v965
  %v1631 = vunpack.c.h.b16 %v966
  %v1632 = vpack.c.b16 %v1629, %v1628
  %v1633 = vpack.c.b16 %v1631, %v1630
  %v1637 = vsel %vm25, %v1622, 0
  %1639 = vmatprep.subr.bf16.mxu0 0
  %1640 = vmatpush1.bf16.msra.mxu0 0
  %1641 = vmatprep.subr.bf16.mxu0 0
  %1642 = vmatpush1.bf16.msra.mxu0 0
  %1643 = vmatprep.subr.bf16.mxu0 0
  %1644 = vmatpush1.bf16.msra.mxu0 0
  %1645 = vmatprep.subr.bf16.mxu0 0
  %1646 = vmatpush1.bf16.msra.mxu0 0
  %1647 = vmatprep.subr.bf16.mxu0 0
  %1648 = vmatpush1.bf16.msra.mxu0 0
  %1649 = vmatprep.subr.bf16.mxu0 0
  %1650 = vmatpush1.bf16.msra.mxu0 0
  %1651 = vmatprep.subr.bf16.mxu0 0
  %1652 = vmatpush1.bf16.msra.mxu0 %v1633
  %1653 = vmatprep.subr.bf16.mxu0 0
  %1654 = vmatpush1.bf16.msra.mxu0 %v1632
  %1655 = vmatprep.subr.bf16.mxu0 0
  %1656 = vmatpush2.bf16.msra.mxu0 0
  %1657 = vmatprep.subr.bf16.mxu0 0
  %1658 = vmatpush2.bf16.msra.mxu0 0
  %1659 = vmatprep.subr.bf16.mxu0 0
  %1660 = vmatpush2.bf16.msra.mxu0 0
  %1661 = vmatprep.subr.bf16.mxu0 0
  %1662 = vmatpush2.bf16.msra.mxu0 0
  %1663 = vmatprep.subr.bf16.mxu0 0
  %1664 = vmatpush2.bf16.msra.mxu0 0
  %1665 = vmatprep.subr.bf16.mxu0 0
  %1666 = vmatpush2.bf16.msra.mxu0 0
  %1667 = vmatprep.subr.bf16.mxu0 0
  %1668 = vmatpush2.bf16.msra.mxu0 0
  %1669 = vmatprep.subr.bf16.mxu0 0
  %1670 = vmatpush2.bf16.msra.mxu0 0
  %1671 = vmatprep.mubr.bf16.mxu0 0
  %1672 = vmatmul.mubr.bf16.gmra.mxu0 %v1637
  %v1673 = vpop.f32.mrf.mxu0
  %v1674 = vadd.f32 %v1627, %v1673
  %v1675 = vpop.f32.mrf.mxu0
  %v1676 = vpop.f32.mrf.mxu0
  %v1677 = vadd.f32 %v1627, %v1676
  %v1678 = vpop.f32.mrf.mxu0
  %1679 = vdwg.mxu0
  %v1680 = vmul.f32 %v1674, 0.5
  %v1681 = vmul.f32 %v1677, 0.5
  %v1682 = vmul.f32 %v1674, 0.044715
  %v1683 = vmul.f32 %v1677, 0.044715
  %v1684 = vmul.f32 %v1682, %v1674
  %v1685 = vmul.f32 %v1683, %v1677
  %v1686 = vmul.f32 %v1684, %v1674
  %v1687 = vmul.f32 %v1685, %v1677
  %v1688 = vadd.f32 %v1674, %v1686
  %v1689 = vadd.f32 %v1677, %v1687
  %v1690 = vmul.f32 %v1688, 0.7978846
  %v1691 = vmul.f32 %v1689, 0.7978846
  %v1692 = vtanh.pop %v1690
  %v1693 = vtanh.pop %v1691
  %v1694 = vadd.f32 %v1692, 1.0
  %v1695 = vadd.f32 %v1693, 1.0
  %v1696 = vmul.f32 %v1680, %v1694
  %v1697 = vmul.f32 %v1681, %v1695
  %s1698 = scalar_lea.vmem %s3, 32
  %v1699 = vld [vmem:[%s1698] sm:$0xf]
  %v1700 = vld [vmem:[%s1698 + $0x4] sm:$0xf]
  %v1701 = vld [vmem:[%s1698 + $0x8] sm:$0xf]
  %v1702 = vld [vmem:[%s1698 + $0xc] sm:$0xf]
  %v1703 = vld [vmem:[%s1698 + $0x10] sm:$0xf]
  %v1704 = vld [vmem:[%s1698 + $0x14] sm:$0xf]
  %v1705 = vld [vmem:[%s1698 + $0x18] sm:$0xf]
  %v1706 = vld [vmem:[%s1698 + $0x1c] sm:$0xf]
  %v1707 = vpack.c.bf16 %v1697, %v1696
  %v1708 = vld [vmem:[%s4 + $0x12] sm:$0x1]
  %v1709 = vlaneseq
  %v1710 = vshrl.u32 %v1709, 7
  %v1711 = vsub.s32 0, %v1710
  %v1712 = vrot.slane %v1708, %v1711
  %v1721 = vunpack.c.l.b16 %v1699
  %v1722 = vunpack.c.l.b16 %v1700
  %v1723 = vunpack.c.l.b16 %v1701
  %v1724 = vunpack.c.l.b16 %v1702
  %v1725 = vunpack.c.l.b16 %v1703
  %v1726 = vunpack.c.l.b16 %v1704
  %v1727 = vunpack.c.l.b16 %v1705
  %v1728 = vunpack.c.l.b16 %v1706
  %v1729 = vpack.c.b16 %v1722, %v1721
  %v1730 = vpack.c.b16 %v1724, %v1723
  %v1731 = vpack.c.b16 %v1726, %v1725
  %v1732 = vpack.c.b16 %v1728, %v1727
  %v1738 = vsel %vm875, %v1707, 0
  %1740 = vmatprep.subr.bf16.mxu0 0
  %1741 = vmatpush1.bf16.msra.mxu0 0
  %1742 = vmatprep.subr.bf16.mxu0 0
  %1743 = vmatpush1.bf16.msra.mxu0 0
  %1744 = vmatprep.subr.bf16.mxu0 0
  %1745 = vmatpush1.bf16.msra.mxu0 0
  %1746 = vmatprep.subr.bf16.mxu0 0
  %1747 = vmatpush1.bf16.msra.mxu0 0
  %1748 = vmatprep.subr.bf16.mxu0 0
  %1749 = vmatpush1.bf16.msra.mxu0 %v1732
  %1750 = vmatprep.subr.bf16.mxu0 0
  %1751 = vmatpush1.bf16.msra.mxu0 %v1731
  %1752 = vmatprep.subr.bf16.mxu0 0
  %1753 = vmatpush1.bf16.msra.mxu0 %v1730
  %1754 = vmatprep.subr.bf16.mxu0 0
  %1755 = vmatpush1.bf16.msra.mxu0 %v1729
  %1756 = vmatprep.subr.bf16.mxu0 0
  %1757 = vmatpush2.bf16.msra.mxu0 0
  %1758 = vmatprep.subr.bf16.mxu0 0
  %1759 = vmatpush2.bf16.msra.mxu0 0
  %1760 = vmatprep.subr.bf16.mxu0 0
  %1761 = vmatpush2.bf16.msra.mxu0 0
  %1762 = vmatprep.subr.bf16.mxu0 0
  %1763 = vmatpush2.bf16.msra.mxu0 0
  %1764 = vmatprep.subr.bf16.mxu0 0
  %1765 = vmatpush2.bf16.msra.mxu0 0
  %1766 = vmatprep.subr.bf16.mxu0 0
  %1767 = vmatpush2.bf16.msra.mxu0 0
  %1768 = vmatprep.subr.bf16.mxu0 0
  %1769 = vmatpush2.bf16.msra.mxu0 0
  %1770 = vmatprep.subr.bf16.mxu0 0
  %1771 = vmatpush2.bf16.msra.mxu0 0
  %1772 = vmatprep.mubr.bf16.mxu0 0
  %1773 = vmatmul.mubr.bf16.gmra.mxu0 %v1738
  %v1774 = vpop.f32.mrf.mxu0
  %v1775 = vadd.f32 %v1712, %v1774
  %v1776 = vpop.f32.mrf.mxu0
  %v1777 = vpop.f32.mrf.mxu0
  %v1778 = vadd.f32 %v1712, %v1777
  %v1779 = vpop.f32.mrf.mxu0
  %1780 = vdwg.mxu0
  %v1781 = vadd.f32 %v1775, %v1620
  %v1782 = vadd.f32 %v1778, %v1621
  %v1783 = vld [vmem:[%s4 + $0x13] sm:$0x1]
  %v1784 = vld [vmem:[%s4 + $0x14] sm:$0x1]
  %v1785 = vsel %vm25, %v1781, 0.0
  %1786 = vadd.xlane.f32.xlu0 %v1785
  %v1787 = vpop.xlane.xlu0 %1786
  %v1788 = vsel %vm25, %v1782, 0.0
  %1789 = vadd.xlane.f32.xlu0 %v1788
  %v1790 = vpop.xlane.xlu0 %1789
  %v1791 = vmul.f32 %v1787, %v32
  %v1792 = vmul.f32 %v1790, %v32
  %v1793 = vsub.f32 %v1781, %v1791
  %v1794 = vsub.f32 %v1782, %v1792
  %v1795 = vmul.f32 %v1793, %v1793
  %v1796 = vmul.f32 %v1794, %v1794
  %v1797 = vsel %vm25, %v1795, 0.0
  %1798 = vadd.xlane.f32.xlu0 %v1797
  %v1799 = vpop.xlane.xlu0 %1798
  %v1800 = vsel %vm25, %v1796, 0.0
  %1801 = vadd.xlane.f32.xlu0 %v1800
  %v1802 = vpop.xlane.xlu0 %1801
  %v1803 = vmul.f32 %v1799, %v32
  %v1804 = vmul.f32 %v1802, %v32
  %v1805 = vadd.f32 %v1803, 1e-12
  %v1806 = vadd.f32 %v1804, 1e-12
  %v1807 = vrsqrt.pop %v1805
  %v1808 = vrsqrt.pop %v1806
  %v1809 = vmul.f32 %v1793, %v1807
  %v1810 = vmul.f32 %v1794, %v1808
  %v1811 = vlaneseq
  %v1812 = vshrl.u32 %v1811, 7
  %v1813 = vsub.s32 0, %v1812
  %v1814 = vrot.slane %v1783, %v1813
  %v1815 = vmul.f32 %v1809, %v1814
  %v1816 = vmul.f32 %v1810, %v1814
  %v1817 = vlaneseq
  %v1818 = vshrl.u32 %v1817, 7
  %v1819 = vsub.s32 0, %v1818
  %v1820 = vrot.slane %v1784, %v1819
  %v1821 = vadd.f32 %v1815, %v1820
  %v1822 = vadd.f32 %v1816, %v1820
  %s1823 = scalar_lea.vmem %s3, 64
  %v1824 = vld [vmem:[%s1823] sm:$0xf]
  %v1825 = vld [vmem:[%s1823 + $0x4] sm:$0xf]
  %v1826 = vld [vmem:[%s1823 + $0x8] sm:$0xf]
  %v1827 = vld [vmem:[%s1823 + $0xc] sm:$0xf]
  %v1828 = vpack.c.bf16 %v1821, %v1821
  %v1829 = vpack.c.bf16 %v1822, %v1822
  %v1830 = vld [vmem:[%s4 + $0x2] sm:$0x1]
  %v1831 = vlaneseq
  %v1832 = vshrl.u32 %v1831, 7
  %v1833 = vsub.s32 0, %v1832
  %v1834 = vrot.slane %v1830, %v1833
  %v1837 = vunpack.c.l.b16 %v1828
  %v1838 = vunpack.c.l.b16 %v1829
  %v1839 = vrot.slane %v1838, 7
  %vm1840 = vcmask 1041409
  %v1841 = vsel %vm1840, %v1839, %v1837
  %v1842 = vpack.c.b16 %v1841, %v1841
  %v1847 = vunpack.c.l.b16 %v1824
  %v1848 = vunpack.c.l.b16 %v1825
  %v1849 = vunpack.c.l.b16 %v1826
  %v1850 = vunpack.c.l.b16 %v1827
  %v1851 = vpack.c.b16 %v1848, %v1847
  %v1852 = vpack.c.b16 %v1850, %v1849
  %v1856 = vsel %vm25, %v1842, 0
  %1858 = vmatprep.subr.bf16.mxu0 0
  %1859 = vmatpush1.bf16.msra.mxu0 0
  %1860 = vmatprep.subr.bf16.mxu0 0
  %1861 = vmatpush1.bf16.msra.mxu0 0
  %1862 = vmatprep.subr.bf16.mxu0 0
  %1863 = vmatpush1.bf16.msra.mxu0 0
  %1864 = vmatprep.subr.bf16.mxu0 0
  %1865 = vmatpush1.bf16.msra.mxu0 0
  %1866 = vmatprep.subr.bf16.mxu0 0
  %1867 = vmatpush1.bf16.msra.mxu0 0
  %1868 = vmatprep.subr.bf16.mxu0 0
  %1869 = vmatpush1.bf16.msra.mxu0 0
  %1870 = vmatprep.subr.bf16.mxu0 0
  %1871 = vmatpush1.bf16.msra.mxu0 %v1852
  %1872 = vmatprep.subr.bf16.mxu0 0
  %1873 = vmatpush1.bf16.msra.mxu0 %v1851
  %1874 = vmatprep.subr.bf16.mxu0 0
  %1875 = vmatpush2.bf16.msra.mxu0 0
  %1876 = vmatprep.subr.bf16.mxu0 0
  %1877 = vmatpush2.bf16.msra.mxu0 0
  %1878 = vmatprep.subr.bf16.mxu0 0
  %1879 = vmatpush2.bf16.msra.mxu0 0
  %1880 = vmatprep.subr.bf16.mxu0 0
  %1881 = vmatpush2.bf16.msra.mxu0 0
  %1882 = vmatprep.subr.bf16.mxu0 0
  %1883 = vmatpush2.bf16.msra.mxu0 0
  %1884 = vmatprep.subr.bf16.mxu0 0
  %1885 = vmatpush2.bf16.msra.mxu0 0
  %1886 = vmatprep.subr.bf16.mxu0 0
  %1887 = vmatpush2.bf16.msra.mxu0 0
  %1888 = vmatprep.subr.bf16.mxu0 0
  %1889 = vmatpush2.bf16.msra.mxu0 0
  %1890 = vmatprep.mubr.bf16.mxu0 0
  %1891 = vmatmul.mubr.bf16.gmra.mxu0 %v1856
  %v1892 = vpop.f32.mrf.mxu0
  %v1893 = vadd.f32 %v1834, %v1892
  %v1894 = vpop.f32.mrf.mxu0
  %v1895 = vpop.f32.mrf.mxu0
  %v1896 = vpop.f32.mrf.mxu0
  %1897 = vdwg.mxu0
  %v1898 = vtanh.pop %v1893
  %v1899 = vld [vmem:[%s4 + $0x3] sm:$0x1]
  %v1900 = vlaneseq
  %v1901 = vshrl.u32 %v1900, 7
  %v1902 = vsub.s32 0, %v1901
  %v1903 = vrot.slane %v1899, %v1902
  %v1904 = vmul.f32 %v1898, %v1903
  %vm1905 = vcmask 254976
  %v1906 = vsel %vm1905, %v1904, 0.0
  %1907 = vadd.xlane.f32.xlu0 %v1906
  %v1908 = vpop.xlane.xlu0 %1907
  %v1909 = vld [vmem:[%s4 + $0x4] sm:$0x1]
  %v1910 = vlaneseq
  %v1911 = vshrl.u32 %v1910, 7
  %v1912 = vsub.s32 0, %v1911
  %v1913 = vrot.slane %v1909, %v1912
  %v1914 = vadd.f32 %v1908, %v1913
  %vm1915 = vcmask 1024
  %1916 = vst.msk [vmem:[%s5] sm:$0x3] %vm1915, %v1914
  // Predicated region
  $region22: #{text_complexity_regressor.1} parent=0 // pred_check
    _
  $region23: #{text_complexity_regressor.1} parent=0 // pred_check_branch
    %1918 = sbr.rel (0) target = $region25
  $region24: #{text_complexity_regressor.1} parent=0 // pred_region
    _
  $region25: #{text_complexity_regressor.1} parent=0 // pred_fallthru
    _
  // Predicated region
  $region26: #{text_complexity_regressor.1} parent=0 // pred_check
    _
  $region27: #{text_complexity_regressor.1} parent=0 // pred_check_branch
    %1920 = sbr.rel (0) target = $region29
  $region28: #{text_complexity_regressor.1} parent=0 // pred_region
    _
  $region29: #{text_complexity_regressor.1} parent=0 // pred_fallthru
    _

</llo_original>
